<compile_context>
chip_gen: v7x
topology: tpu7x:2x2x1
jax: 0.10.0
libtpu: 0.0.40
codegen_flags: <defaults>
</compile_context>

<pallas_src>
import functools

import jax
import jax.numpy as jnp
from jax import lax
from jax.experimental import pallas as pl
from jax.experimental.pallas import tpu as pltpu


def _round_up(a, b):
    return (a + b - 1) // b * b


_NEG = -1e30


def _default_compute_dtype():
    """bf16 on v6e / v7x, f32 on v5e and older (per perf review)."""
    try:
        kind = jax.devices()[0].device_kind.lower()
    except Exception:
        return jnp.float32
    for tag in ("v2", "v3", "v4", "v5"):
        if tag in kind:
            return jnp.float32
    return jnp.bfloat16


def _pool_kernel(batch_ref, xT_ref, waT_ref, w2vT_ref, bsv_ref, rt_ref, pm_ref,
                 out_ref, m_scr, l_scr, acc_scr, *, chunk, unroll):
    """Fused multi-head global-attention pooling, one node DMA-tile per grid step."""
    f32 = jnp.float32
    t = pl.program_id(0)
    nt = pl.num_programs(0)

    nhD, nh = rt_ref.shape          # nh * D, number of heads
    D = pm_ref.shape[1]
    B = out_ref.shape[0]            # number of graphs
    R2 = w2vT_ref.shape[0]
    gate_pad = R2 - nhD             # 8-aligned start of the value rows
    tn = xT_ref.shape[1]            # nodes per DMA tile
    n_chunks = tn // chunk
    cdtype = xT_ref.dtype           # MXU operand dtype (f32 or bf16)

    @pl.when(t == 0)
    def _init():
        m_scr[...] = jnp.full_like(m_scr, _NEG)
        l_scr[...] = jnp.zeros_like(l_scr)
        acc_scr[...] = jnp.zeros_like(acc_scr)

    # Loop-invariant loads / constants (hoisted out of the chunk loop).
    waT = waT_ref[...]              # [2*GHp, E_aug]  (first-layer bias folded in)
    w2vT = w2vT_ref[...]            # [R2, 2*GHp]     fused gate|value second layers
    bsv = bsv_ref[...].astype(f32)  # [R2, 1]         second-layer biases
    rt = rt_ref[...]                # [nhD, nh]       head-expansion (0/1)
    graph_iota = lax.broadcasted_iota(jnp.int32, (B, chunk), 0)

    def chunk_body(c, carry):
        start = pl.multiple_of(c * chunk, chunk)
        bid = batch_ref[:, pl.ds(start, chunk)]            # [1, chunk] i32 (lane-dense)
        xt = xT_ref[:, pl.ds(start, chunk)]                # [E_aug, chunk]

        # Fused first layers of all heads (gate | value); bias rides the matmul.
        hid = jnp.dot(waT, xt, preferred_element_type=f32)         # [2*GHp, chunk]
        hid = jnp.maximum(hid, 0.0).astype(cdtype)

        # Fused second layers: single K = 2*GHp contraction, nodes on lanes.
        sv = jnp.dot(w2vT, hid, preferred_element_type=f32) + bsv  # [R2, chunk] f32
        s_t = sv[0:nh, :]                                  # [nh, chunk]  gate scores
        v_t = sv[gate_pad:gate_pad + nhD, :]               # [nhD, chunk] values

        # Graph membership (graphs on sublanes, nodes on lanes).  Padding nodes
        # (bid == B) get an all-zero mask column AND a clamped score, so they
        # never overflow exp and never contribute to the reductions.
        valid = bid < B                                    # [1, chunk]
        mb = bid == graph_iota                             # [B, chunk] bool
        mm_f = mb.astype(f32)
        mask_add = jnp.where(mb, 0.0, f32(_NEG))           # [B, chunk]
        s_t = jnp.where(valid, s_t, f32(_NEG))

        # Per-(graph, head) masked max over the node lanes; all heads in one pass.
        parts = [jnp.max(s_t + mask_add[b:b + 1, :], axis=1, keepdims=True)
                 for b in range(B)]
        m_tile = jnp.concatenate(parts, axis=1)            # [nh, B]

        m_old = m_scr[...]
        m_new = jnp.maximum(m_old, m_tile)
        corr = jnp.exp(m_old - m_new)                      # [nh, B]  <= 1
        m_scr[...] = m_new

        # Per-node stabilizer (MXU gather-by-dot, f32) and exponentials.
        m_node = jnp.dot(m_new, mm_f, preferred_element_type=f32)  # [nh, chunk]
        e_t = jnp.exp(s_t - m_node)                                 # [nh, chunk]

        # Segment reductions as contractions over the node (lane) axis.
        l_tile = lax.dot_general(e_t, mm_f, (((1,), (1,)), ((), ())),
                                 preferred_element_type=f32)        # [nh, B]
        e_exp = jnp.dot(rt, e_t, preferred_element_type=f32)        # [nhD, chunk]
        evt = (e_exp * v_t).astype(cdtype)                          # [nhD, chunk]
        acc_tile = lax.dot_general(evt, mb.astype(cdtype),
                                   (((1,), (1,)), ((), ())),
                                   preferred_element_type=f32)      # [nhD, B]

        corr_exp = jnp.dot(rt, corr, preferred_element_type=f32)    # [nhD, B]
        l_scr[...] = l_scr[...] * corr + l_tile
        acc_scr[...] = acc_scr[...] * corr_exp + acc_tile
        return carry

    lax.fori_loop(0, n_chunks, chunk_body, 0, unroll=unroll)

    @pl.when(t == nt - 1)
    def _finalize():
        use_approx = cdtype != jnp.float32
        inv_l = pl.reciprocal(l_scr[...] + f32(1e-16), approx=use_approx)  # [nh, B]
        inv_exp = jnp.dot(rt, inv_l, preferred_element_type=f32)           # [nhD, B]
        pooled = acc_scr[...] * inv_exp                                    # [nhD, B]
        out = lax.dot_general(pooled, pm_ref[...], (((0,), (0,)), ((), ())),
                              preferred_element_type=f32)                  # [B, D]
        out_ref[...] = out.astype(out_ref.dtype)


def _pack_params(params, compute_dtype):
    """Pack per-head weights into fused, transposed block matrices."""
    f32 = jnp.float32
    w1, b1 = params["w1"].astype(f32), params["b1"].astype(f32)
    w2, b2 = params["w2"].astype(f32), params["b2"].astype(f32)
    v1, c1 = params["v1"].astype(f32), params["c1"].astype(f32)
    v2, c2 = params["v2"].astype(f32), params["c2"].astype(f32)
    nh, E, H = w1.shape
    D = v2.shape[2]
    GH = nh * H
    GHp = _round_up(GH, 8)
    nhD = nh * D
    gate_pad = _round_up(nh, 8)
    R2 = gate_pad + nhD
    E_aug = _round_up(E + 1, 8)     # extra ones-column folds the first-layer biases

    # First layers, all heads, transposed: rows [0,GH) gate, [GHp,GHp+GH) value.
    w1_t = jnp.transpose(w1, (0, 2, 1)).reshape(GH, E)
    v1_t = jnp.transpose(v1, (0, 2, 1)).reshape(GH, E)
    waT = jnp.zeros((2 * GHp, E_aug), f32)
    waT = waT.at[:GH, :E].set(w1_t)
    waT = waT.at[:GH, E].set(b1.reshape(GH))
    waT = waT.at[GHp:GHp + GH, :E].set(v1_t)
    waT = waT.at[GHp:GHp + GH, E].set(c1.reshape(GH))

    # Second layers fused into one block matrix (transposed):
    # rows [0, nh) gate scores, rows [gate_pad, gate_pad+nhD) values.
    w2vT = jnp.zeros((R2, 2 * GHp), f32)
    bsv = jnp.zeros((R2, 1), f32)
    for h in range(nh):
        w2vT = w2vT.at[h, h * H:(h + 1) * H].set(w2[h, :, 0])
        w2vT = w2vT.at[gate_pad + h * D:gate_pad + (h + 1) * D,
                       GHp + h * H:GHp + (h + 1) * H].set(v2[h].T)
    bsv = bsv.at[:nh, 0].set(b2.reshape(nh))
    bsv = bsv.at[gate_pad:gate_pad + nhD, 0].set(c2.reshape(nhD))

    # Constant helpers: head-expansion (rt) and head-mean (pm), hoisted host-side.
    rt = jnp.zeros((nhD, nh), f32)
    for h in range(nh):
        rt = rt.at[h * D:(h + 1) * D, h].set(1.0)
    pm = jnp.tile(jnp.eye(D, dtype=f32), (nh, 1)) / nh                  # [nhD, D]

    return (waT.astype(compute_dtype), w2vT.astype(compute_dtype), bsv, rt, pm,
            E_aug)


def gnn_multihead_attn_drug_pooling(x, batch, params, num_graphs, *,
                                    compute_dtype=None, tile_n=2048, chunk_n=256):
    """x: [N, embed_dim] f32, batch: [N] int graph ids in [0, num_graphs)."""
    if compute_dtype is None:
        compute_dtype = _default_compute_dtype()
    N, E = x.shape
    nh = params["w1"].shape[0]
    D = params["v2"].shape[2]
    nhD = nh * D

    waT, w2vT, bsv, rt, pm, E_aug = _pack_params(params, compute_dtype)

    # DMA tile (tn) is a multiple of the in-kernel compute chunk (128-aligned).
    chunk = _round_up(min(chunk_n, max(N, 1)), 128)
    tn = max(_round_up(min(tile_n, max(N, 1)), chunk), chunk)
    n_pad = _round_up(N, tn)
    num_tiles = n_pad // tn
    n_chunks = tn // chunk

    # Node features transposed (features on sublanes, nodes on lanes) with an
    # appended ones row so the first-layer biases ride the matmul.
    xT_aug = jnp.zeros((E_aug, n_pad), jnp.float32)
    xT_aug = xT_aug.at[:E, :].set(
        jnp.pad(x.astype(jnp.float32), ((0, n_pad - N), (0, 0))).T)
    xT_aug = xT_aug.at[E, :].set(1.0)
    xT_aug = xT_aug.astype(compute_dtype)

    # Lane-dense graph ids; padding nodes tagged with id == num_graphs.
    batch2d = jnp.pad(batch.astype(jnp.int32), (0, n_pad - N),
                      constant_values=num_graphs).reshape(1, n_pad)

    kernel = functools.partial(_pool_kernel, chunk=chunk,
                               unroll=(n_chunks <= 8))

    grid_spec = pltpu.PrefetchScalarGridSpec(
        num_scalar_prefetch=0,
        grid=(num_tiles,),
        in_specs=[
            pl.BlockSpec((1, tn), lambda t: (0, t)),          # graph ids (lanes)
            pl.BlockSpec((E_aug, tn), lambda t: (0, t)),      # node features^T
            pl.BlockSpec(waT.shape, lambda t: (0, 0)),        # fused first layers^T
            pl.BlockSpec(w2vT.shape, lambda t: (0, 0)),       # fused second layers^T
            pl.BlockSpec(bsv.shape, lambda t: (0, 0)),        # second-layer biases
            pl.BlockSpec(rt.shape, lambda t: (0, 0)),         # head expansion
            pl.BlockSpec(pm.shape, lambda t: (0, 0)),         # head mean
        ],
        out_specs=pl.BlockSpec((num_graphs, D), lambda t: (0, 0)),
        scratch_shapes=[
            pltpu.VMEM((nh, num_graphs), jnp.float32),        # running per-graph max
            pltpu.VMEM((nh, num_graphs), jnp.float32),        # running softmax denom
            pltpu.VMEM((nhD, num_graphs), jnp.float32),       # running numerator^T
        ],
    )

    return pl.pallas_call(
        kernel,
        out_shape=jax.ShapeDtypeStruct((num_graphs, D), jnp.float32),
        grid_spec=grid_spec,
        compiler_params=pltpu.CompilerParams(
            dimension_semantics=("arbitrary",),   # node-tile axis carries scratch state
            vmem_limit_bytes=8 * 1024 * 1024),
    )(batch2d, xT_aug, waT, w2vT, bsv, rt, pm)


def _reference(x, batch, params, num_graphs):
    """Pure-JAX reference mirroring the PyTorch forward."""
    nh = params["w1"].shape[0]
    out = 0.0
    for h in range(nh):
        g1 = jnp.maximum(x @ params["w1"][h] + params["b1"][h], 0.0)
        s = (g1 @ params["w2"][h] + params["b2"][h])[:, 0]              # [N]
        v1 = jnp.maximum(x @ params["v1"][h] + params["c1"][h], 0.0)
        v = v1 @ params["v2"][h] + params["c2"][h]                      # [N, D]
        m = jax.ops.segment_max(s, batch, num_segments=num_graphs)
        e = jnp.exp(s - m[batch])
        denom = jax.ops.segment_sum(e, batch, num_segments=num_graphs) + 1e-16
        alpha = e / denom[batch]
        out_h = jax.ops.segment_sum(alpha[:, None] * v, batch,
                                    num_segments=num_graphs)
        out = out + out_h
    return out / nh


def init_params(key, embed_dim, hidden_dim, output_embed_dim, n_heads):
    ks = jax.random.split(key, 8)
    scale = 0.1
    return {
        "w1": scale * jax.random.normal(ks[0], (n_heads, embed_dim, hidden_dim), jnp.float32),
        "b1": scale * jax.random.normal(ks[1], (n_heads, 1, hidden_dim), jnp.float32),
        "w2": scale * jax.random.normal(ks[2], (n_heads, hidden_dim, 1), jnp.float32),
        "b2": scale * jax.random.normal(ks[3], (n_heads, 1, 1), jnp.float32),
        "v1": scale * jax.random.normal(ks[4], (n_heads, embed_dim, hidden_dim), jnp.float32),
        "c1": scale * jax.random.normal(ks[5], (n_heads, 1, hidden_dim), jnp.float32),
        "v2": scale * jax.random.normal(ks[6], (n_heads, hidden_dim, output_embed_dim), jnp.float32),
        "c2": scale * jax.random.normal(ks[7], (n_heads, 1, output_embed_dim), jnp.float32),
    }


if __name__ == "__main__":
    embed_dim, hidden_dim, output_embed_dim, n_heads = 16, 32, 8, 4

    key = jax.random.PRNGKey(0)
    kx1, kx2, kp = jax.random.split(key, 3)
    params = init_params(kp, embed_dim, hidden_dim, output_embed_dim, n_heads)

    # ---- case 1: tiny graph batch, single tile / single chunk, f32 (exact) ----
    N1, B1 = 24, 3
    x1 = jax.random.normal(kx1, (N1, embed_dim), jnp.float32)
    batch1 = jnp.concatenate([
        jnp.zeros((7,), jnp.int32),
        jnp.ones((9,), jnp.int32),
        jnp.full((8,), 2, jnp.int32),
    ])
    out1 = jax.block_until_ready(
        gnn_multihead_attn_drug_pooling(x1, batch1, params, B1,
                                        compute_dtype=jnp.float32))
    ref1 = _reference(x1, batch1, params, B1)
    assert out1.shape == (B1, output_embed_dim)
    assert jnp.allclose(out1, ref1, rtol=1e-4, atol=1e-5), (out1, ref1)

    # ---- case 2: multi-tile grid AND multi-chunk inner loop, empty graph, f32 ----
    N2, B2 = 300, 5
    sizes = (70, 0, 110, 60, 60)   # graph 1 is empty
    x2 = jax.random.normal(kx2, (N2, embed_dim), jnp.float32)
    batch2 = jnp.concatenate(
        [jnp.full((s,), g, jnp.int32) for g, s in enumerate(sizes)])
    out2 = jax.block_until_ready(
        gnn_multihead_attn_drug_pooling(x2, batch2, params, B2,
                                        compute_dtype=jnp.float32,
                                        tile_n=256, chunk_n=128))
    ref2 = _reference(x2, batch2, params, B2)
    assert out2.shape == (B2, output_embed_dim)
    assert jnp.allclose(out2, ref2, rtol=1e-4, atol=1e-5), (out2, ref2)

    # ---- case 3: auto compute dtype (bf16 on v6e/v7x, f32 on v5e-), loose tol ----
    out3 = jax.block_until_ready(
        gnn_multihead_attn_drug_pooling(x2, batch2, params, B2))
    assert jnp.allclose(out3, ref2, rtol=5e-2, atol=1e-2), (out3, ref2)

    # TODO(synk): Dropout / AttnDropout are identity at p=0 (module defaults); no train-mode RNG.
    print("KERNEL_OK")
</pallas_src>

<mosaic_0001>
module attributes {stable_mosaic.version = 11 : i64} {
  func.func @_pool_kernel(%arg0: i32, %arg1: memref<1x128xi32, #tpu.memory_space<vmem>>, %arg2: memref<24x128xf32, #tpu.memory_space<vmem>>, %arg3: memref<256x24xf32, #tpu.memory_space<vmem>>, %arg4: memref<40x256xf32, #tpu.memory_space<vmem>>, %arg5: memref<40x1xf32, #tpu.memory_space<vmem>>, %arg6: memref<32x4xf32, #tpu.memory_space<vmem>>, %arg7: memref<32x8xf32, #tpu.memory_space<vmem>>, %arg8: memref<3x8xf32, #tpu.memory_space<vmem>>, %arg9: memref<4x3xf32, #tpu.memory_space<vmem>>, %arg10: memref<4x3xf32, #tpu.memory_space<vmem>>, %arg11: memref<32x3xf32, #tpu.memory_space<vmem>>) attributes {dimension_semantics = [#tpu.dimension_semantics<arbitrary>], iteration_bounds = array<i64: 1>, scalar_prefetch = 0 : i64, scratch_operands = 3 : i64, tpu.core_type = #tpu.core_type<tc>, window_params = [{transform_indices = @transform_0, window_bounds = array<i64: 1, 128>}, {transform_indices = @transform_1, window_bounds = array<i64: 24, 128>}, {pipeline_mode = #tpu.pipeline_mode<synchronous>, transform_indices = @transform_2, window_bounds = array<i64: 256, 24>}, {pipeline_mode = #tpu.pipeline_mode<synchronous>, transform_indices = @transform_3, window_bounds = array<i64: 40, 256>}, {pipeline_mode = #tpu.pipeline_mode<synchronous>, transform_indices = @transform_4, window_bounds = array<i64: 40, 1>}, {pipeline_mode = #tpu.pipeline_mode<synchronous>, transform_indices = @transform_5, window_bounds = array<i64: 32, 4>}, {pipeline_mode = #tpu.pipeline_mode<synchronous>, transform_indices = @transform_6, window_bounds = array<i64: 32, 8>}, {pipeline_mode = #tpu.pipeline_mode<synchronous>, transform_indices = @transform_7, window_bounds = array<i64: 3, 8>}]} {
    %c0_i32 = arith.constant 0 : i32
    %0 = arith.cmpi eq, %arg0, %c0_i32 : i32
    %1 = arith.extui %0 : i1 to i32
    %c0_i32_0 = arith.constant 0 : i32
    %2 = arith.cmpi ne, %1, %c0_i32_0 : i32
    scf.if %2 {
      %cst_38 = arith.constant -1.000000e+30 : f32
      %77 = vector.broadcast %cst_38 : f32 to vector<4x3xf32>
      %c0_39 = arith.constant 0 : index
      %c0_40 = arith.constant 0 : index
      %78 = vector.load %arg9[%c0_39, %c0_40] : memref<4x3xf32, #tpu.memory_space<vmem>>, vector<4x3xf32>
      tpu.vector_store %arg9[%c0_39, %c0_40], %77 {strides = array<i32>} : memref<4x3xf32, #tpu.memory_space<vmem>>, vector<4x3xf32>,
      %cst_41 = arith.constant 0.000000e+00 : f32
      %79 = vector.broadcast %cst_41 : f32 to vector<4x3xf32>
      %c0_42 = arith.constant 0 : index
      %c0_43 = arith.constant 0 : index
      %80 = vector.load %arg10[%c0_42, %c0_43] : memref<4x3xf32, #tpu.memory_space<vmem>>, vector<4x3xf32>
      tpu.vector_store %arg10[%c0_42, %c0_43], %79 {strides = array<i32>} : memref<4x3xf32, #tpu.memory_space<vmem>>, vector<4x3xf32>,
      %cst_44 = arith.constant 0.000000e+00 : f32
      %81 = vector.broadcast %cst_44 : f32 to vector<32x3xf32>
      %c0_45 = arith.constant 0 : index
      %c0_46 = arith.constant 0 : index
      %82 = vector.load %arg11[%c0_45, %c0_46] : memref<32x3xf32, #tpu.memory_space<vmem>>, vector<32x3xf32>
      tpu.vector_store %arg11[%c0_45, %c0_46], %81 {strides = array<i32>} : memref<32x3xf32, #tpu.memory_space<vmem>>, vector<32x3xf32>,
    } else {
    }
    %c0 = arith.constant 0 : index
    %c0_1 = arith.constant 0 : index
    %3 = vector.load %arg3[%c0, %c0_1] : memref<256x24xf32, #tpu.memory_space<vmem>>, vector<256x24xf32>
    %c0_2 = arith.constant 0 : index
    %c0_3 = arith.constant 0 : index
    %4 = vector.load %arg4[%c0_2, %c0_3] : memref<40x256xf32, #tpu.memory_space<vmem>>, vector<40x256xf32>
    %c0_4 = arith.constant 0 : index
    %c0_5 = arith.constant 0 : index
    %5 = vector.load %arg5[%c0_4, %c0_5] : memref<40x1xf32, #tpu.memory_space<vmem>>, vector<40x1xf32>
    %c0_6 = arith.constant 0 : index
    %c0_7 = arith.constant 0 : index
    %6 = vector.load %arg6[%c0_6, %c0_7] : memref<32x4xf32, #tpu.memory_space<vmem>>, vector<32x4xf32>
    %7 = tpu.iota {dimensions = array<i32: 0>} : vector<3x128xi32>
    %c0_i32_8 = arith.constant 0 : i32
    %c128_i32 = arith.constant 128 : i32
    %8 = arith.muli %c0_i32_8, %c128_i32 : i32
    %9 = tpu.assume_multiple %8, 128 : i32
    %c0_9 = arith.constant 0 : index
    %10 = arith.index_cast %9 : i32 to index
    %11 = vector.load %arg1[%c0_9, %10] : memref<1x128xi32, #tpu.memory_space<vmem>>, vector<1x128xi32>
    %c0_10 = arith.constant 0 : index
    %12 = arith.index_cast %9 : i32 to index
    %13 = vector.load %arg2[%c0_10, %12] : memref<24x128xf32, #tpu.memory_space<vmem>>, vector<24x128xf32>
    %cst = arith.constant dense<0.000000e+00> : vector<256x128xf32>
    %14 = tpu.matmul %3, %13, %cst {dimension_numbers = #tpu.dot_dimension_numbers<[1], [0], [0], [1], [0, 0, 1, 1], [], []>} : vector<256x24xf32>, vector<24x128xf32>, vector<256x128xf32> -> vector<256x128xf32>
    %cst_11 = arith.constant 0.000000e+00 : f32
    %15 = vector.broadcast %cst_11 : f32 to vector<256x128xf32>
    %16 = arith.maximumf %14, %15 : vector<256x128xf32>
    %cst_12 = arith.constant dense<0.000000e+00> : vector<40x128xf32>
    %17 = tpu.matmul %4, %16, %cst_12 {dimension_numbers = #tpu.dot_dimension_numbers<[1], [0], [0], [1], [0, 0, 1, 1], [], []>} : vector<40x256xf32>, vector<256x128xf32>, vector<40x128xf32> -> vector<40x128xf32>
    %18 = vector.broadcast %5 : vector<40x1xf32> to vector<40x128xf32>
    %19 = arith.addf %17, %18 : vector<40x128xf32>
    %20 = vector.extract_strided_slice %19 {offsets = [0, 0], sizes = [4, 128], strides = [1, 1]} : vector<40x128xf32> to vector<4x128xf32>
    %21 = vector.extract_strided_slice %19 {offsets = [8, 0], sizes = [32, 128], strides = [1, 1]} : vector<40x128xf32> to vector<32x128xf32>
    %c3_i32 = arith.constant 3 : i32
    %22 = vector.broadcast %c3_i32 : i32 to vector<1x128xi32>
    %23 = arith.cmpi slt, %11, %22 : vector<1x128xi32>
    %24 = vector.broadcast %11 : vector<1x128xi32> to vector<3x128xi32>
    %25 = arith.cmpi eq, %24, %7 : vector<3x128xi32>
    %26 = arith.extui %25 : vector<3x128xi1> to vector<3x128xi32>
    %27 = arith.sitofp %26 : vector<3x128xi32> to vector<3x128xf32>
    %cst_13 = arith.constant 0.000000e+00 : f32
    %cst_14 = arith.constant -1.000000e+30 : f32
    %28 = vector.broadcast %cst_13 : f32 to vector<3x128xf32>
    %29 = vector.broadcast %cst_14 : f32 to vector<3x128xf32>
    %30 = arith.select %25, %28, %29 : vector<3x128xi1>, vector<3x128xf32>
    %cst_15 = arith.constant -1.000000e+30 : f32
    %31 = vector.shape_cast %23 : vector<1x128xi1> to vector<1x128xi1>
    %32 = vector.broadcast %31 : vector<1x128xi1> to vector<4x128xi1>
    %33 = vector.broadcast %cst_15 : f32 to vector<4x128xf32>
    %34 = arith.select %32, %20, %33 : vector<4x128xi1>, vector<4x128xf32>
    %35 = vector.extract_strided_slice %30 {offsets = [0, 0], sizes = [1, 128], strides = [1, 1]} : vector<3x128xf32> to vector<1x128xf32>
    %36 = vector.broadcast %35 : vector<1x128xf32> to vector<4x128xf32>
    %37 = arith.addf %34, %36 : vector<4x128xf32>
    %cst_16 = arith.constant dense<0xFF800000> : vector<4xf32>
    %38 = vector.multi_reduction <maximumf>, %37, %cst_16 [1] : vector<4x128xf32> to vector<4xf32>
    %39 = vector.shape_cast %38 : vector<4xf32> to vector<4x1xf32>
    %40 = vector.extract_strided_slice %30 {offsets = [1, 0], sizes = [1, 128], strides = [1, 1]} : vector<3x128xf32> to vector<1x128xf32>
    %41 = vector.broadcast %40 : vector<1x128xf32> to vector<4x128xf32>
    %42 = arith.addf %34, %41 : vector<4x128xf32>
    %cst_17 = arith.constant dense<0xFF800000> : vector<4xf32>
    %43 = vector.multi_reduction <maximumf>, %42, %cst_17 [1] : vector<4x128xf32> to vector<4xf32>
    %44 = vector.shape_cast %43 : vector<4xf32> to vector<4x1xf32>
    %45 = vector.extract_strided_slice %30 {offsets = [2, 0], sizes = [1, 128], strides = [1, 1]} : vector<3x128xf32> to vector<1x128xf32>
    %46 = vector.broadcast %45 : vector<1x128xf32> to vector<4x128xf32>
    %47 = arith.addf %34, %46 : vector<4x128xf32>
    %cst_18 = arith.constant dense<0xFF800000> : vector<4xf32>
    %48 = vector.multi_reduction <maximumf>, %47, %cst_18 [1] : vector<4x128xf32> to vector<4xf32>
    %49 = vector.shape_cast %48 : vector<4xf32> to vector<4x1xf32>
    %50 = tpu.concatenate %39, %44, %49 in 1 : vector<4x1xf32>, vector<4x1xf32>, vector<4x1xf32> -> vector<4x3xf32>
    %c0_19 = arith.constant 0 : index
    %c0_20 = arith.constant 0 : index
    %51 = vector.load %arg9[%c0_19, %c0_20] : memref<4x3xf32, #tpu.memory_space<vmem>>, vector<4x3xf32>
    %52 = arith.maximumf %51, %50 : vector<4x3xf32>
    %53 = arith.subf %51, %52 : vector<4x3xf32>
    %54 = math.exp %53 : vector<4x3xf32>
    %c0_21 = arith.constant 0 : index
    %c0_22 = arith.constant 0 : index
    %55 = vector.load %arg9[%c0_21, %c0_22] : memref<4x3xf32, #tpu.memory_space<vmem>>, vector<4x3xf32>
    tpu.vector_store %arg9[%c0_21, %c0_22], %52 {strides = array<i32>} : memref<4x3xf32, #tpu.memory_space<vmem>>, vector<4x3xf32>,
    %cst_23 = arith.constant dense<0.000000e+00> : vector<4x128xf32>
    %56 = tpu.matmul %52, %27, %cst_23 {dimension_numbers = #tpu.dot_dimension_numbers<[1], [0], [0], [1], [0, 0, 1, 1], [], []>} : vector<4x3xf32>, vector<3x128xf32>, vector<4x128xf32> -> vector<4x128xf32>
    %57 = arith.subf %34, %56 : vector<4x128xf32>
    %58 = math.exp %57 : vector<4x128xf32>
    %cst_24 = arith.constant dense<0.000000e+00> : vector<4x3xf32>
    %59 = tpu.matmul %58, %27, %cst_24 {dimension_numbers = #tpu.dot_dimension_numbers<[1], [1], [0], [0], [0, 0, 1, 0], [], []>} : vector<4x128xf32>, vector<3x128xf32>, vector<4x3xf32> -> vector<4x3xf32>
    %cst_25 = arith.constant dense<0.000000e+00> : vector<32x128xf32>
    %60 = tpu.matmul %6, %58, %cst_25 {dimension_numbers = #tpu.dot_dimension_numbers<[1], [0], [0], [1], [0, 0, 1, 1], [], []>} : vector<32x4xf32>, vector<4x128xf32>, vector<32x128xf32> -> vector<32x128xf32>
    %61 = arith.mulf %60, %21 : vector<32x128xf32>
    %62 = arith.extui %25 : vector<3x128xi1> to vector<3x128xi32>
    %63 = arith.sitofp %62 : vector<3x128xi32> to vector<3x128xf32>
    %cst_26 = arith.constant dense<0.000000e+00> : vector<32x3xf32>
    %64 = tpu.matmul %61, %63, %cst_26 {dimension_numbers = #tpu.dot_dimension_numbers<[1], [1], [0], [0], [0, 0, 1, 0], [], []>} : vector<32x128xf32>, vector<3x128xf32>, vector<32x3xf32> -> vector<32x3xf32>
    %cst_27 = arith.constant dense<0.000000e+00> : vector<32x3xf32>
    %65 = tpu.matmul %6, %54, %cst_27 {dimension_numbers = #tpu.dot_dimension_numbers<[1], [0], [0], [1], [0, 0, 1, 1], [], []>} : vector<32x4xf32>, vector<4x3xf32>, vector<32x3xf32> -> vector<32x3xf32>
    %c0_28 = arith.constant 0 : index
    %c0_29 = arith.constant 0 : index
    %66 = vector.load %arg10[%c0_28, %c0_29] : memref<4x3xf32, #tpu.memory_space<vmem>>, vector<4x3xf32>
    %67 = arith.mulf %66, %54 : vector<4x3xf32>
    %68 = arith.addf %67, %59 : vector<4x3xf32>
    %c0_30 = arith.constant 0 : index
    %c0_31 = arith.constant 0 : index
    %69 = vector.load %arg10[%c0_30, %c0_31] : memref<4x3xf32, #tpu.memory_space<vmem>>, vector<4x3xf32>
    tpu.vector_store %arg10[%c0_30, %c0_31], %68 {strides = array<i32>} : memref<4x3xf32, #tpu.memory_space<vmem>>, vector<4x3xf32>,
    %c0_32 = arith.constant 0 : index
    %c0_33 = arith.constant 0 : index
    %70 = vector.load %arg11[%c0_32, %c0_33] : memref<32x3xf32, #tpu.memory_space<vmem>>, vector<32x3xf32>
    %71 = arith.mulf %70, %65 : vector<32x3xf32>
    %72 = arith.addf %71, %64 : vector<32x3xf32>
    %c0_34 = arith.constant 0 : index
    %c0_35 = arith.constant 0 : index
    %73 = vector.load %arg11[%c0_34, %c0_35] : memref<32x3xf32, #tpu.memory_space<vmem>>, vector<32x3xf32>
    tpu.vector_store %arg11[%c0_34, %c0_35], %72 {strides = array<i32>} : memref<32x3xf32, #tpu.memory_space<vmem>>, vector<32x3xf32>,
    %c1_i32 = arith.constant 1 : i32
    %c0_i32_36 = arith.constant 0 : i32
    %74 = arith.cmpi eq, %arg0, %c0_i32_36 : i32
    %75 = arith.extui %74 : i1 to i32
    %c0_i32_37 = arith.constant 0 : i32
    %76 = arith.cmpi ne, %75, %c0_i32_37 : i32
    scf.if %76 {
      %c0_38 = arith.constant 0 : index
      %c0_39 = arith.constant 0 : index
      %77 = vector.load %arg10[%c0_38, %c0_39] : memref<4x3xf32, #tpu.memory_space<vmem>>, vector<4x3xf32>
      %cst_40 = arith.constant 1.000000e-16 : f32
      %78 = vector.broadcast %cst_40 : f32 to vector<4x3xf32>
      %79 = arith.addf %77, %78 : vector<4x3xf32>
      %80 = tpu.reciprocal %79 : vector<4x3xf32> -> vector<4x3xf32>
      %cst_41 = arith.constant dense<0.000000e+00> : vector<32x3xf32>
      %81 = tpu.matmul %6, %80, %cst_41 {dimension_numbers = #tpu.dot_dimension_numbers<[1], [0], [0], [1], [0, 0, 1, 1], [], []>} : vector<32x4xf32>, vector<4x3xf32>, vector<32x3xf32> -> vector<32x3xf32>
      %c0_42 = arith.constant 0 : index
      %c0_43 = arith.constant 0 : index
      %82 = vector.load %arg11[%c0_42, %c0_43] : memref<32x3xf32, #tpu.memory_space<vmem>>, vector<32x3xf32>
      %83 = arith.mulf %82, %81 : vector<32x3xf32>
      %c0_44 = arith.constant 0 : index
      %c0_45 = arith.constant 0 : index
      %84 = vector.load %arg7[%c0_44, %c0_45] : memref<32x8xf32, #tpu.memory_space<vmem>>, vector<32x8xf32>
      %cst_46 = arith.constant dense<0.000000e+00> : vector<3x8xf32>
      %85 = tpu.matmul %83, %84, %cst_46 {dimension_numbers = #tpu.dot_dimension_numbers<[0], [0], [1], [1], [0, 1, 1, 1], [], []>} : vector<32x3xf32>, vector<32x8xf32>, vector<3x8xf32> -> vector<3x8xf32>
      %c0_47 = arith.constant 0 : index
      %c0_48 = arith.constant 0 : index
      %86 = vector.load %arg8[%c0_47, %c0_48] : memref<3x8xf32, #tpu.memory_space<vmem>>, vector<3x8xf32>
      tpu.vector_store %arg8[%c0_47, %c0_48], %85 {strides = array<i32>} : memref<3x8xf32, #tpu.memory_space<vmem>>, vector<3x8xf32>,
    } else {
    }
    return
  }
  func.func @transform_0(%arg0: i32) -> (i32, i32) {
    %c0_i32 = arith.constant 0 : i32
    %c0_i32_0 = arith.constant 0 : i32
    return %c0_i32, %arg0 : i32, i32
  }
  func.func @transform_1(%arg0: i32) -> (i32, i32) {
    %c0_i32 = arith.constant 0 : i32
    %c0_i32_0 = arith.constant 0 : i32
    return %c0_i32, %arg0 : i32, i32
  }
  func.func @transform_2(%arg0: i32) -> (i32, i32) {
    %c0_i32 = arith.constant 0 : i32
    %c0_i32_0 = arith.constant 0 : i32
    %c0_i32_1 = arith.constant 0 : i32
    return %c0_i32, %c0_i32_0 : i32, i32
  }
  func.func @transform_3(%arg0: i32) -> (i32, i32) {
    %c0_i32 = arith.constant 0 : i32
    %c0_i32_0 = arith.constant 0 : i32
    %c0_i32_1 = arith.constant 0 : i32
    return %c0_i32, %c0_i32_0 : i32, i32
  }
  func.func @transform_4(%arg0: i32) -> (i32, i32) {
    %c0_i32 = arith.constant 0 : i32
    %c0_i32_0 = arith.constant 0 : i32
    %c0_i32_1 = arith.constant 0 : i32
    return %c0_i32, %c0_i32_0 : i32, i32
  }
  func.func @transform_5(%arg0: i32) -> (i32, i32) {
    %c0_i32 = arith.constant 0 : i32
    %c0_i32_0 = arith.constant 0 : i32
    %c0_i32_1 = arith.constant 0 : i32
    return %c0_i32, %c0_i32_0 : i32, i32
  }
  func.func @transform_6(%arg0: i32) -> (i32, i32) {
    %c0_i32 = arith.constant 0 : i32
    %c0_i32_0 = arith.constant 0 : i32
    %c0_i32_1 = arith.constant 0 : i32
    return %c0_i32, %c0_i32_0 : i32, i32
  }
  func.func @transform_7(%arg0: i32) -> (i32, i32) {
    %c0_i32 = arith.constant 0 : i32
    %c0_i32_0 = arith.constant 0 : i32
    %c0_i32_1 = arith.constant 0 : i32
    return %c0_i32, %c0_i32_0 : i32, i32
  }
}

</mosaic_0001>

<llo_original>
// kernel: tpu_custom_call.1
$region0: #{tpu_custom_call.1}
  #allocation0 [shape = 'u32[]', space=smem, size = 0x4, offset = 0x4, fixed_abs, tag = 'smem constant byte address 0x4 - core index']
  #allocation1 [shape = 'u32[144,128]{1,0:T(1,128)}', space=vmem, size = 0x12000, scoped, tag = 'internal scratch']
  #allocation2 [shape = 'f32[4,3]{1,0:T(4,128)}', space=vmem, size = 0x800, scoped, tag = 'scratch operand']
  #allocation3 [shape = 'f32[4,3]{1,0:T(4,128)}', space=vmem, size = 0x800, scoped, tag = 'scratch operand']
  #allocation4 [shape = 'f32[32,3]{1,0:T(8,128)}', space=vmem, size = 0x4000, scoped, tag = 'scratch operand']
  %s0 = inlined_call_operand.vmem [shape: s32[1,128], index: 0, kind: input, shape index: {}]
  %s1 = inlined_call_operand.vmem [shape: f32[24,128], index: 1, kind: input, shape index: {}]
  %s2 = inlined_call_operand.vmem [shape: f32[256,24], index: 2, kind: input, shape index: {}]
  %s3 = inlined_call_operand.vmem [shape: f32[40,256], index: 3, kind: input, shape index: {}]
  %s4 = inlined_call_operand.vmem [shape: f32[40,1], index: 4, kind: input, shape index: {}]
  %s5 = inlined_call_operand.vmem [shape: f32[32,4], index: 5, kind: input, shape index: {}]
  %s6 = inlined_call_operand.vmem [shape: f32[32,8], index: 6, kind: input, shape index: {}]
  %s7 = inlined_call_operand.hbm [shape: f32[3,8], index: 7, kind: output, shape index: {}]
  %s8 = sld [smem:[#allocation0]]
  $region46: #{tpu_custom_call.1} parent=0
    _
  %s10 = ssub.s32 1, %s8
  %s11 = scalar_select 0, %s10, %s8
  $region1: #{tpu_custom_call.1} parent=0
    #allocation5 [shape = 'u8[2048]{0}', space=vmem, size = 0x800, scoped, tag = 'output window, operand 0, single buffered']
    #allocation6 [shape = 's32[1]{0}', space=sflag, size = 0x4, scoped, tag = 'scoped memory for tpu_custom_call.1']
    %12 = vsyncpa [#allocation6], 0
    // Predicated region
    $region2: #{tpu_custom_call.1} parent=1 // pred_check
      _
    $region3: #{tpu_custom_call.1} parent=1 // pred_check_branch
      %14 = sbr.rel (0) target = $region5
    $region4: #{tpu_custom_call.1} parent=1 // pred_region
      _
    $region5: #{tpu_custom_call.1} parent=1 // pred_fallthru
      _
    // Predicated region
    $region6: #{tpu_custom_call.1} parent=1 // pred_check
      _
    $region7: #{tpu_custom_call.1} parent=1 // pred_check_branch
      %16 = sbr.rel (0) target = $region9
    $region8: #{tpu_custom_call.1} parent=1 // pred_region
      _
    $region9: #{tpu_custom_call.1} parent=1 // pred_fallthru
      _
    // Predicated region
    $region10: #{tpu_custom_call.1} parent=1 // pred_check
      _
    $region11: #{tpu_custom_call.1} parent=1 // pred_check_branch
      %18 = sbr.rel (0) target = $region13
    $region12: #{tpu_custom_call.1} parent=1 // pred_region
      _
    $region13: #{tpu_custom_call.1} parent=1 // pred_fallthru
      _
    // Predicated region
    $region14: #{tpu_custom_call.1} parent=1 // pred_check
      _
    $region15: #{tpu_custom_call.1} parent=1 // pred_check_branch
      %20 = sbr.rel (0) target = $region17
    $region16: #{tpu_custom_call.1} parent=1 // pred_region
      _
    $region17: #{tpu_custom_call.1} parent=1 // pred_fallthru
      _
    // Predicated region
    $region18: #{tpu_custom_call.1} parent=1 // pred_check
      _
    $region19: #{tpu_custom_call.1} parent=1 // pred_check_branch
      %22 = sbr.rel (0) target = $region21
    $region20: #{tpu_custom_call.1} parent=1 // pred_region
      _
    $region21: #{tpu_custom_call.1} parent=1 // pred_fallthru
      _
    // Predicated region
    $region22: #{tpu_custom_call.1} parent=1 // pred_check
      _
    $region23: #{tpu_custom_call.1} parent=1 // pred_check_branch
      %24 = sbr.rel (0) target = $region25
    $region24: #{tpu_custom_call.1} parent=1 // pred_region
      _
    $region25: #{tpu_custom_call.1} parent=1 // pred_fallthru
      _
    // Predicated region
    $region26: #{tpu_custom_call.1} parent=1 // pred_check
      _
    $region27: #{tpu_custom_call.1} parent=1 // pred_check_branch
      %26 = sbr.rel (0) target = $region29
    $region28: #{tpu_custom_call.1} parent=1 // pred_region
      _
    $region29: #{tpu_custom_call.1} parent=1 // pred_fallthru
      _
    %p27 = scmp.eq.s32.totalorder 0, 0
    // Predicated region
    $region30: #{tpu_custom_call.1} parent=1 // pred_check
      %p28 = pneg %p27
    $region31: #{tpu_custom_call.1} parent=1 // pred_check_branch
      %30 = sbr.rel (%p28) target = $region33
    $region32: #{tpu_custom_call.1} parent=1 // pred_region
      %vm31 = vcmask 19456
      %32 = vst.msk [vmem:[#allocation2] sm:$0xf] %vm31, -1e+30
      %33 = vst.msk [vmem:[#allocation3] sm:$0xf] %vm31, 0.0
      %vm34 = vcmask 23552
      %35 = vst.msk [vmem:[#allocation4] sm:$0xff] %vm34, 0.0
      %36 = vst.msk [vmem:[#allocation4 + $0x8] sm:$0xff] %vm34, 0.0
      %37 = vst.msk [vmem:[#allocation4 + $0x10] sm:$0xff] %vm34, 0.0
      %38 = vst.msk [vmem:[#allocation4 + $0x18] sm:$0xff] %vm34, 0.0
    $region33: #{tpu_custom_call.1} parent=1 // pred_fallthru
      _
    %v39 = vld [vmem:[%s2] sm:$0xff]
    %v40 = vld [vmem:[%s2 + $0x8] sm:$0xff]
    %v41 = vld [vmem:[%s2 + $0x10] sm:$0xff]
    %v42 = vld [vmem:[%s2 + $0x18] sm:$0xff]
    %v43 = vld [vmem:[%s2 + $0x20] sm:$0xff]
    %v44 = vld [vmem:[%s2 + $0x28] sm:$0xff]
    %v45 = vld [vmem:[%s2 + $0x30] sm:$0xff]
    %v46 = vld [vmem:[%s2 + $0x38] sm:$0xff]
    %v47 = vld [vmem:[%s2 + $0x40] sm:$0xff]
    %v48 = vld [vmem:[%s2 + $0x48] sm:$0xff]
    %v49 = vld [vmem:[%s2 + $0x50] sm:$0xff]
    %v50 = vld [vmem:[%s2 + $0x58] sm:$0xff]
    %v51 = vld [vmem:[%s2 + $0x60] sm:$0xff]
    %v52 = vld [vmem:[%s2 + $0x68] sm:$0xff]
    %v53 = vld [vmem:[%s2 + $0x70] sm:$0xff]
    %v54 = vld [vmem:[%s2 + $0x78] sm:$0xff]
    %v55 = vld [vmem:[%s2 + $0x80] sm:$0xff]
    %v56 = vld [vmem:[%s2 + $0x88] sm:$0xff]
    %v57 = vld [vmem:[%s2 + $0x90] sm:$0xff]
    %v58 = vld [vmem:[%s2 + $0x98] sm:$0xff]
    %v59 = vld [vmem:[%s2 + $0xa0] sm:$0xff]
    %v60 = vld [vmem:[%s2 + $0xa8] sm:$0xff]
    %v61 = vld [vmem:[%s2 + $0xb0] sm:$0xff]
    %v62 = vld [vmem:[%s2 + $0xb8] sm:$0xff]
    %v63 = vld [vmem:[%s2 + $0xc0] sm:$0xff]
    %v64 = vld [vmem:[%s2 + $0xc8] sm:$0xff]
    %v65 = vld [vmem:[%s2 + $0xd0] sm:$0xff]
    %v66 = vld [vmem:[%s2 + $0xd8] sm:$0xff]
    %v67 = vld [vmem:[%s2 + $0xe0] sm:$0xff]
    %v68 = vld [vmem:[%s2 + $0xe8] sm:$0xff]
    %v69 = vld [vmem:[%s2 + $0xf0] sm:$0xff]
    %v70 = vld [vmem:[%s2 + $0xf8] sm:$0xff]
    %v71 = vld [vmem:[%s3] sm:$0xff]
    %v72 = vld [vmem:[%s3 + $0x8] sm:$0xff]
    %v73 = vld [vmem:[%s3 + $0x10] sm:$0xff]
    %v74 = vld [vmem:[%s3 + $0x18] sm:$0xff]
    %v75 = vld [vmem:[%s3 + $0x20] sm:$0xff]
    %v76 = vld [vmem:[%s3 + $0x28] sm:$0xff]
    %v77 = vld [vmem:[%s3 + $0x30] sm:$0xff]
    %v78 = vld [vmem:[%s3 + $0x38] sm:$0xff]
    %v79 = vld [vmem:[%s3 + $0x40] sm:$0xff]
    %v80 = vld [vmem:[%s3 + $0x48] sm:$0xff]
    %v81 = vld [vmem:[%s4] sm:$0xff]
    %v82 = vld [vmem:[%s4 + $0x8] sm:$0xff]
    %v83 = vld [vmem:[%s4 + $0x10] sm:$0xff]
    %v84 = vld [vmem:[%s4 + $0x18] sm:$0xff]
    %v85 = vld [vmem:[%s4 + $0x20] sm:$0xff]
    %v86 = vld [vmem:[%s5] sm:$0xff]
    %v87 = vld [vmem:[%s5 + $0x8] sm:$0xff]
    %v88 = vld [vmem:[%s5 + $0x10] sm:$0xff]
    %v89 = vld [vmem:[%s5 + $0x18] sm:$0xff]
    %v90 = vlaneseq
    %v91 = vshrl.u32 %v90, 7
    %v92 = vld [vmem:[%s0] sm:$0x1]
    %v93 = vld [vmem:[%s1] sm:$0xff]
    %v94 = vld [vmem:[%s1 + $0x8] sm:$0xff]
    %v95 = vld [vmem:[%s1 + $0x10] sm:$0xff]
    %vm96 = vcmask 195584
    %v98 = vsel %vm96, %v39, 0
    %v101 = vsel %vm96, %v40, 0
    %v104 = vsel %vm96, %v41, 0
    %v107 = vsel %vm96, %v42, 0
    %v110 = vsel %vm96, %v43, 0
    %v113 = vsel %vm96, %v44, 0
    %v116 = vsel %vm96, %v45, 0
    %v119 = vsel %vm96, %v46, 0
    %v122 = vsel %vm96, %v47, 0
    %v125 = vsel %vm96, %v48, 0
    %v128 = vsel %vm96, %v49, 0
    %v131 = vsel %vm96, %v50, 0
    %v134 = vsel %vm96, %v51, 0
    %v137 = vsel %vm96, %v52, 0
    %v140 = vsel %vm96, %v53, 0
    %v143 = vsel %vm96, %v54, 0
    %v146 = vsel %vm96, %v55, 0
    %v149 = vsel %vm96, %v56, 0
    %v152 = vsel %vm96, %v57, 0
    %v155 = vsel %vm96, %v58, 0
    %v158 = vsel %vm96, %v59, 0
    %v161 = vsel %vm96, %v60, 0
    %v164 = vsel %vm96, %v61, 0
    %v167 = vsel %vm96, %v62, 0
    %v170 = vsel %vm96, %v63, 0
    %v173 = vsel %vm96, %v64, 0
    %v176 = vsel %vm96, %v65, 0
    %v179 = vsel %vm96, %v66, 0
    %v182 = vsel %vm96, %v67, 0
    %v185 = vsel %vm96, %v68, 0
    %v188 = vsel %vm96, %v69, 0
    %v191 = vsel %vm96, %v70, 0
    %193 = vmatprep.subr.mxu0 0.0
    %194 = vmatpush1.msra.mxu0 %v93
    %195 = vmatprep.subr.mxu0 0.0
    %196 = vmatpush1.msra.mxu0 %v94
    %197 = vmatprep.subr.mxu0 0.0
    %198 = vmatpush1.msra.mxu0 %v95
    %199 = vmatprep.subr.mxu0 0.0
    %200 = vmatpush1.msra.mxu0 0.0
    %201 = vmatprep.subr.mxu0 0.0
    %202 = vmatpush1.msra.mxu0 0.0
    %203 = vmatprep.subr.mxu0 0.0
    %204 = vmatpush1.msra.mxu0 0.0
    %205 = vmatprep.subr.mxu0 0.0
    %206 = vmatpush1.msra.mxu0 0.0
    %207 = vmatprep.subr.mxu0 0.0
    %208 = vmatpush1.msra.mxu0 0.0
    %209 = vmatprep.subr.mxu0 0.0
    %210 = vmatpush1.msra.mxu0 0.0
    %211 = vmatprep.subr.mxu0 0.0
    %212 = vmatpush1.msra.mxu0 0.0
    %213 = vmatprep.subr.mxu0 0.0
    %214 = vmatpush1.msra.mxu0 0.0
    %215 = vmatprep.subr.mxu0 0.0
    %216 = vmatpush1.msra.mxu0 0.0
    %217 = vmatprep.subr.mxu0 0.0
    %218 = vmatpush1.msra.mxu0 0.0
    %219 = vmatprep.subr.mxu0 0.0
    %220 = vmatpush1.msra.mxu0 0.0
    %221 = vmatprep.subr.mxu0 0.0
    %222 = vmatpush1.msra.mxu0 0.0
    %223 = vmatprep.subr.mxu0 0.0
    %224 = vmatpush1.msra.mxu0 0.0
    %225 = vmatprep.subr.mxu0 0.0
    %226 = vmatpush1.msra.mxu0 0.0
    %227 = vmatprep.subr.mxu0 0.0
    %228 = vmatpush1.msra.mxu0 0.0
    %229 = vmatprep.subr.mxu0 0.0
    %230 = vmatpush1.msra.mxu0 0.0
    %231 = vmatprep.subr.mxu0 0.0
    %232 = vmatpush1.msra.mxu0 0.0
    %233 = vmatprep.subr.mxu0 0.0
    %234 = vmatpush1.msra.mxu0 0.0
    %235 = vmatprep.subr.mxu0 0.0
    %236 = vmatpush1.msra.mxu0 0.0
    %237 = vmatprep.subr.mxu0 0.0
    %238 = vmatpush1.msra.mxu0 0.0
    %239 = vmatprep.subr.mxu0 0.0
    %240 = vmatpush1.msra.mxu0 0.0
    %241 = vmatprep.subr.mxu0 0.0
    %242 = vmatpush1.msra.mxu0 0.0
    %243 = vmatprep.subr.mxu0 0.0
    %244 = vmatpush1.msra.mxu0 0.0
    %245 = vmatprep.subr.mxu0 0.0
    %246 = vmatpush1.msra.mxu0 0.0
    %247 = vmatprep.subr.mxu0 0.0
    %248 = vmatpush1.msra.mxu0 0.0
    %249 = vmatprep.subr.mxu0 0.0
    %250 = vmatpush1.msra.mxu0 0.0
    %251 = vmatprep.subr.mxu0 0.0
    %252 = vmatpush1.msra.mxu0 0.0
    %253 = vmatprep.subr.mxu0 0.0
    %254 = vmatpush1.msra.mxu0 0.0
    %255 = vmatprep.subr.mxu0 0.0
    %256 = vmatpush1.msra.mxu0 0.0
    %257 = vmatprep.mubr.f32.mxu0 0.0
    %258 = vmatmul.mubr.f32.gmra.mrb[0].mxu0 %v98
    %v259 = vpop.f32.mrb[0].mxu0
    %v260 = vadd.f32 0.0, %v259
    %v261 = vpop.f32.mrb[0].mxu0
    %262 = vmatprep.mubr.f32.mxu0 0.0
    %263 = vmatmul.mubr.f32.gmra.mrb[0].mxu0 %v101
    %v264 = vpop.f32.mrb[0].mxu0
    %v265 = vadd.f32 0.0, %v264
    %v266 = vpop.f32.mrb[0].mxu0
    %267 = vmatprep.mubr.f32.mxu0 0.0
    %268 = vmatmul.mubr.f32.gmra.mrb[0].mxu0 %v104
    %v269 = vpop.f32.mrb[0].mxu0
    %v270 = vadd.f32 0.0, %v269
    %v271 = vpop.f32.mrb[0].mxu0
    %272 = vmatprep.mubr.f32.mxu0 0.0
    %273 = vmatmul.mubr.f32.gmra.mrb[0].mxu0 %v107
    %v274 = vpop.f32.mrb[0].mxu0
    %v275 = vadd.f32 0.0, %v274
    %v276 = vpop.f32.mrb[0].mxu0
    %277 = vmatprep.mubr.f32.mxu0 0.0
    %278 = vmatmul.mubr.f32.gmra.mrb[0].mxu0 %v110
    %v279 = vpop.f32.mrb[0].mxu0
    %v280 = vadd.f32 0.0, %v279
    %v281 = vpop.f32.mrb[0].mxu0
    %282 = vmatprep.mubr.f32.mxu0 0.0
    %283 = vmatmul.mubr.f32.gmra.mrb[0].mxu0 %v113
    %v284 = vpop.f32.mrb[0].mxu0
    %v285 = vadd.f32 0.0, %v284
    %v286 = vpop.f32.mrb[0].mxu0
    %287 = vmatprep.mubr.f32.mxu0 0.0
    %288 = vmatmul.mubr.f32.gmra.mrb[0].mxu0 %v116
    %v289 = vpop.f32.mrb[0].mxu0
    %v290 = vadd.f32 0.0, %v289
    %v291 = vpop.f32.mrb[0].mxu0
    %292 = vmatprep.mubr.f32.mxu0 0.0
    %293 = vmatmul.mubr.f32.gmra.mrb[0].mxu0 %v119
    %v294 = vpop.f32.mrb[0].mxu0
    %v295 = vadd.f32 0.0, %v294
    %v296 = vpop.f32.mrb[0].mxu0
    %297 = vmatprep.mubr.f32.mxu0 0.0
    %298 = vmatmul.mubr.f32.gmra.mrb[0].mxu0 %v122
    %v299 = vpop.f32.mrb[0].mxu0
    %v300 = vadd.f32 0.0, %v299
    %v301 = vpop.f32.mrb[0].mxu0
    %302 = vmatprep.mubr.f32.mxu0 0.0
    %303 = vmatmul.mubr.f32.gmra.mrb[0].mxu0 %v125
    %v304 = vpop.f32.mrb[0].mxu0
    %v305 = vadd.f32 0.0, %v304
    %v306 = vpop.f32.mrb[0].mxu0
    %307 = vmatprep.mubr.f32.mxu0 0.0
    %308 = vmatmul.mubr.f32.gmra.mrb[0].mxu0 %v128
    %v309 = vpop.f32.mrb[0].mxu0
    %v310 = vadd.f32 0.0, %v309
    %v311 = vpop.f32.mrb[0].mxu0
    %312 = vmatprep.mubr.f32.mxu0 0.0
    %313 = vmatmul.mubr.f32.gmra.mrb[0].mxu0 %v131
    %v314 = vpop.f32.mrb[0].mxu0
    %v315 = vadd.f32 0.0, %v314
    %v316 = vpop.f32.mrb[0].mxu0
    %317 = vmatprep.mubr.f32.mxu0 0.0
    %318 = vmatmul.mubr.f32.gmra.mrb[0].mxu0 %v134
    %v319 = vpop.f32.mrb[0].mxu0
    %v320 = vadd.f32 0.0, %v319
    %v321 = vpop.f32.mrb[0].mxu0
    %322 = vmatprep.mubr.f32.mxu0 0.0
    %323 = vmatmul.mubr.f32.gmra.mrb[0].mxu0 %v137
    %v324 = vpop.f32.mrb[0].mxu0
    %v325 = vadd.f32 0.0, %v324
    %v326 = vpop.f32.mrb[0].mxu0
    %327 = vmatprep.mubr.f32.mxu0 0.0
    %328 = vmatmul.mubr.f32.gmra.mrb[0].mxu0 %v140
    %v329 = vpop.f32.mrb[0].mxu0
    %v330 = vadd.f32 0.0, %v329
    %v331 = vpop.f32.mrb[0].mxu0
    %332 = vmatprep.mubr.f32.mxu0 0.0
    %333 = vmatmul.mubr.f32.gmra.mrb[0].mxu0 %v143
    %v334 = vpop.f32.mrb[0].mxu0
    %v335 = vadd.f32 0.0, %v334
    %v336 = vpop.f32.mrb[0].mxu0
    %337 = vmatprep.mubr.f32.mxu0 0.0
    %338 = vmatmul.mubr.f32.gmra.mrb[0].mxu0 %v146
    %v339 = vpop.f32.mrb[0].mxu0
    %v340 = vadd.f32 0.0, %v339
    %v341 = vpop.f32.mrb[0].mxu0
    %342 = vmatprep.mubr.f32.mxu0 0.0
    %343 = vmatmul.mubr.f32.gmra.mrb[0].mxu0 %v149
    %v344 = vpop.f32.mrb[0].mxu0
    %v345 = vadd.f32 0.0, %v344
    %v346 = vpop.f32.mrb[0].mxu0
    %347 = vmatprep.mubr.f32.mxu0 0.0
    %348 = vmatmul.mubr.f32.gmra.mrb[0].mxu0 %v152
    %v349 = vpop.f32.mrb[0].mxu0
    %v350 = vadd.f32 0.0, %v349
    %v351 = vpop.f32.mrb[0].mxu0
    %352 = vmatprep.mubr.f32.mxu0 0.0
    %353 = vmatmul.mubr.f32.gmra.mrb[0].mxu0 %v155
    %v354 = vpop.f32.mrb[0].mxu0
    %v355 = vadd.f32 0.0, %v354
    %v356 = vpop.f32.mrb[0].mxu0
    %357 = vmatprep.mubr.f32.mxu0 0.0
    %358 = vmatmul.mubr.f32.gmra.mrb[0].mxu0 %v158
    %v359 = vpop.f32.mrb[0].mxu0
    %v360 = vadd.f32 0.0, %v359
    %v361 = vpop.f32.mrb[0].mxu0
    %362 = vmatprep.mubr.f32.mxu0 0.0
    %363 = vmatmul.mubr.f32.gmra.mrb[0].mxu0 %v161
    %v364 = vpop.f32.mrb[0].mxu0
    %v365 = vadd.f32 0.0, %v364
    %v366 = vpop.f32.mrb[0].mxu0
    %367 = vmatprep.mubr.f32.mxu0 0.0
    %368 = vmatmul.mubr.f32.gmra.mrb[0].mxu0 %v164
    %v369 = vpop.f32.mrb[0].mxu0
    %v370 = vadd.f32 0.0, %v369
    %v371 = vpop.f32.mrb[0].mxu0
    %372 = vmatprep.mubr.f32.mxu0 0.0
    %373 = vmatmul.mubr.f32.gmra.mrb[0].mxu0 %v167
    %v374 = vpop.f32.mrb[0].mxu0
    %v375 = vadd.f32 0.0, %v374
    %v376 = vpop.f32.mrb[0].mxu0
    %377 = vmatprep.mubr.f32.mxu0 0.0
    %378 = vmatmul.mubr.f32.gmra.mrb[0].mxu0 %v170
    %v379 = vpop.f32.mrb[0].mxu0
    %v380 = vadd.f32 0.0, %v379
    %v381 = vpop.f32.mrb[0].mxu0
    %382 = vmatprep.mubr.f32.mxu0 0.0
    %383 = vmatmul.mubr.f32.gmra.mrb[0].mxu0 %v173
    %v384 = vpop.f32.mrb[0].mxu0
    %v385 = vadd.f32 0.0, %v384
    %v386 = vpop.f32.mrb[0].mxu0
    %387 = vmatprep.mubr.f32.mxu0 0.0
    %388 = vmatmul.mubr.f32.gmra.mrb[0].mxu0 %v176
    %v389 = vpop.f32.mrb[0].mxu0
    %v390 = vadd.f32 0.0, %v389
    %v391 = vpop.f32.mrb[0].mxu0
    %392 = vmatprep.mubr.f32.mxu0 0.0
    %393 = vmatmul.mubr.f32.gmra.mrb[0].mxu0 %v179
    %v394 = vpop.f32.mrb[0].mxu0
    %v395 = vadd.f32 0.0, %v394
    %v396 = vpop.f32.mrb[0].mxu0
    %397 = vmatprep.mubr.f32.mxu0 0.0
    %398 = vmatmul.mubr.f32.gmra.mrb[0].mxu0 %v182
    %v399 = vpop.f32.mrb[0].mxu0
    %v400 = vadd.f32 0.0, %v399
    %v401 = vpop.f32.mrb[0].mxu0
    %402 = vmatprep.mubr.f32.mxu0 0.0
    %403 = vmatmul.mubr.f32.gmra.mrb[0].mxu0 %v185
    %v404 = vpop.f32.mrb[0].mxu0
    %v405 = vadd.f32 0.0, %v404
    %v406 = vpop.f32.mrb[0].mxu0
    %407 = vmatprep.mubr.f32.mxu0 0.0
    %408 = vmatmul.mubr.f32.gmra.mrb[0].mxu0 %v188
    %v409 = vpop.f32.mrb[0].mxu0
    %v410 = vadd.f32 0.0, %v409
    %v411 = vpop.f32.mrb[0].mxu0
    %412 = vmatprep.mubr.f32.mxu0 0.0
    %413 = vmatmul.mubr.f32.gmra.mrb[0].mxu0 %v191
    %v414 = vpop.f32.mrb[0].mxu0
    %v415 = vadd.f32 0.0, %v414
    %v416 = vpop.f32.mrb[0].mxu0
    %417 = vdwg.mxu0
    %v418 = vmax.f32 %v260, 0.0
    %v419 = vmax.f32 %v265, 0.0
    %v420 = vmax.f32 %v270, 0.0
    %v421 = vmax.f32 %v275, 0.0
    %v422 = vmax.f32 %v280, 0.0
    %v423 = vmax.f32 %v285, 0.0
    %v424 = vmax.f32 %v290, 0.0
    %v425 = vmax.f32 %v295, 0.0
    %v426 = vmax.f32 %v300, 0.0
    %v427 = vmax.f32 %v305, 0.0
    %v428 = vmax.f32 %v310, 0.0
    %v429 = vmax.f32 %v315, 0.0
    %v430 = vmax.f32 %v320, 0.0
    %v431 = vmax.f32 %v325, 0.0
    %v432 = vmax.f32 %v330, 0.0
    %v433 = vmax.f32 %v335, 0.0
    %v434 = vmax.f32 %v340, 0.0
    %v435 = vmax.f32 %v345, 0.0
    %v436 = vmax.f32 %v350, 0.0
    %v437 = vmax.f32 %v355, 0.0
    %v438 = vmax.f32 %v360, 0.0
    %v439 = vmax.f32 %v365, 0.0
    %v440 = vmax.f32 %v370, 0.0
    %v441 = vmax.f32 %v375, 0.0
    %v442 = vmax.f32 %v380, 0.0
    %v443 = vmax.f32 %v385, 0.0
    %v444 = vmax.f32 %v390, 0.0
    %v445 = vmax.f32 %v395, 0.0
    %v446 = vmax.f32 %v400, 0.0
    %v447 = vmax.f32 %v405, 0.0
    %v448 = vmax.f32 %v410, 0.0
    %v449 = vmax.f32 %v415, 0.0
    %451 = vset.pattern.permute.xlu0 0
    %452 = vperm.xlu0 %451, %v81
    %v453 = vpop.permute.xlu0 %452
    %456 = vset.pattern.permute.xlu0 0
    %457 = vperm.xlu0 %456, %v82
    %v458 = vpop.permute.xlu0 %457
    %461 = vset.pattern.permute.xlu0 0
    %462 = vperm.xlu0 %461, %v83
    %v463 = vpop.permute.xlu0 %462
    %466 = vset.pattern.permute.xlu0 0
    %467 = vperm.xlu0 %466, %v84
    %v468 = vpop.permute.xlu0 %467
    %471 = vset.pattern.permute.xlu0 0
    %472 = vperm.xlu0 %471, %v85
    %v473 = vpop.permute.xlu0 %472
    %475 = vmatprep.subr.mxu0 0.0
    %476 = vmatpush1.msra.mxu0 %v418
    %477 = vmatprep.subr.mxu0 0.0
    %478 = vmatpush1.msra.mxu0 %v419
    %479 = vmatprep.subr.mxu0 0.0
    %480 = vmatpush1.msra.mxu0 %v420
    %481 = vmatprep.subr.mxu0 0.0
    %482 = vmatpush1.msra.mxu0 %v421
    %483 = vmatprep.subr.mxu0 0.0
    %484 = vmatpush1.msra.mxu0 %v422
    %485 = vmatprep.subr.mxu0 0.0
    %486 = vmatpush1.msra.mxu0 %v423
    %487 = vmatprep.subr.mxu0 0.0
    %488 = vmatpush1.msra.mxu0 %v424
    %489 = vmatprep.subr.mxu0 0.0
    %490 = vmatpush1.msra.mxu0 %v425
    %491 = vmatprep.subr.mxu0 0.0
    %492 = vmatpush1.msra.mxu0 %v426
    %493 = vmatprep.subr.mxu0 0.0
    %494 = vmatpush1.msra.mxu0 %v427
    %495 = vmatprep.subr.mxu0 0.0
    %496 = vmatpush1.msra.mxu0 %v428
    %497 = vmatprep.subr.mxu0 0.0
    %498 = vmatpush1.msra.mxu0 %v429
    %499 = vmatprep.subr.mxu0 0.0
    %500 = vmatpush1.msra.mxu0 %v430
    %501 = vmatprep.subr.mxu0 0.0
    %502 = vmatpush1.msra.mxu0 %v431
    %503 = vmatprep.subr.mxu0 0.0
    %504 = vmatpush1.msra.mxu0 %v432
    %505 = vmatprep.subr.mxu0 0.0
    %506 = vmatpush1.msra.mxu0 %v433
    %507 = vmatprep.subr.mxu0 0.0
    %508 = vmatpush1.msra.mxu0 %v434
    %509 = vmatprep.subr.mxu0 0.0
    %510 = vmatpush1.msra.mxu0 %v435
    %511 = vmatprep.subr.mxu0 0.0
    %512 = vmatpush1.msra.mxu0 %v436
    %513 = vmatprep.subr.mxu0 0.0
    %514 = vmatpush1.msra.mxu0 %v437
    %515 = vmatprep.subr.mxu0 0.0
    %516 = vmatpush1.msra.mxu0 %v438
    %517 = vmatprep.subr.mxu0 0.0
    %518 = vmatpush1.msra.mxu0 %v439
    %519 = vmatprep.subr.mxu0 0.0
    %520 = vmatpush1.msra.mxu0 %v440
    %521 = vmatprep.subr.mxu0 0.0
    %522 = vmatpush1.msra.mxu0 %v441
    %523 = vmatprep.subr.mxu0 0.0
    %524 = vmatpush1.msra.mxu0 %v442
    %525 = vmatprep.subr.mxu0 0.0
    %526 = vmatpush1.msra.mxu0 %v443
    %527 = vmatprep.subr.mxu0 0.0
    %528 = vmatpush1.msra.mxu0 %v444
    %529 = vmatprep.subr.mxu0 0.0
    %530 = vmatpush1.msra.mxu0 %v445
    %531 = vmatprep.subr.mxu0 0.0
    %532 = vmatpush1.msra.mxu0 %v446
    %533 = vmatprep.subr.mxu0 0.0
    %534 = vmatpush1.msra.mxu0 %v447
    %535 = vmatprep.subr.mxu0 0.0
    %536 = vmatpush1.msra.mxu0 %v448
    %537 = vmatprep.subr.mxu0 0.0
    %538 = vmatpush1.msra.mxu0 %v449
    %539 = vmatprep.mubr.f32.mxu0 %v72
    %540 = vmatmul.mubr.f32.gmra.mrb[0].mxu0 %v71
    %v541 = vpop.f32.mrb[0].mxu0
    %v542 = vadd.f32 %v453, %v541
    %v543 = vpop.f32.mrb[0].mxu0
    %544 = vmatprep.mubr.f32.mxu0 %v74
    %545 = vmatmul.mubr.f32.gmra.mrb[0].mxu0 %v73
    %v546 = vpop.f32.mrb[0].mxu0
    %v547 = vadd.f32 %v458, %v546
    %v548 = vpop.f32.mrb[0].mxu0
    %549 = vmatprep.mubr.f32.mxu0 %v76
    %550 = vmatmul.mubr.f32.gmra.mrb[0].mxu0 %v75
    %v551 = vpop.f32.mrb[0].mxu0
    %v552 = vadd.f32 %v463, %v551
    %v553 = vpop.f32.mrb[0].mxu0
    %554 = vmatprep.mubr.f32.mxu0 %v78
    %555 = vmatmul.mubr.f32.gmra.mrb[0].mxu0 %v77
    %v556 = vpop.f32.mrb[0].mxu0
    %v557 = vadd.f32 %v468, %v556
    %v558 = vpop.f32.mrb[0].mxu0
    %559 = vmatprep.mubr.f32.mxu0 %v80
    %560 = vmatmul.mubr.f32.gmra.mrb[0].mxu0 %v79
    %v561 = vpop.f32.mrb[0].mxu0
    %v562 = vadd.f32 %v473, %v561
    %v563 = vpop.f32.mrb[0].mxu0
    %564 = vdwg.mxu0
    %vm565 = vcmp.lt.s32.totalorder %v92, 3
    %v566 = vlaneseq
    %v567 = vshrl.u32 %v566, 7
    %v568 = vsub.s32 0, %v567
    %v569 = vrot.slane %v92, %v568
    %vm570 = vcmp.eq.s32.totalorder %v569, %v91
    %v571 = vsel %vm570, 1, 0
    %v572 = vcvt.s32.f32 %v571
    %v573 = vsel %vm570, 0.0, -1e+30
    %v574 = vsel %vm565, 1, 0
    %v575 = vlaneseq
    %v576 = vshrl.u32 %v575, 7
    %v577 = vsub.s32 0, %v576
    %v578 = vrot.slane %v574, %v577
    %vm579 = vcmp.eq.s32.totalorder %v578, 1
    %v580 = vsel %vm579, %v542, -1e+30
    %v581 = vlaneseq
    %v582 = vshrl.u32 %v581, 7
    %v583 = vsub.s32 0, %v582
    %v584 = vrot.slane %v573, %v583
    %v585 = vadd.f32 %v580, %v584
    %vm586 = vcmask 1043456
    %v587 = vsel %vm586, %v585, -inf
    %588 = vmax.xlane.f32.xlu0 %v587
    %v589 = vpop.xlane.xlu0 %588
    %v590 = vlaneseq
    %v591 = vshrl.u32 %v590, 7
    %v592 = vsub.s32 1, %v591
    %v593 = vrot.slane %v573, %v592
    %v594 = vadd.f32 %v580, %v593
    %v595 = vsel %vm586, %v594, -inf
    %596 = vmax.xlane.f32.xlu0 %v595
    %v597 = vpop.xlane.xlu0 %596
    %v598 = vlaneseq
    %v599 = vshrl.u32 %v598, 7
    %v600 = vsub.s32 2, %v599
    %v601 = vrot.slane %v573, %v600
    %v602 = vadd.f32 %v580, %v601
    %v603 = vsel %vm586, %v602, -inf
    %604 = vmax.xlane.f32.xlu0 %v603
    %v605 = vpop.xlane.xlu0 %604
    %vm606 = vcmask 7168
    %v607 = vsel %vm606, %v589, %v597
    %vm608 = vcmask 15360
    %v609 = vsel %vm608, %v607, %v605
    %v610 = vld [vmem:[#allocation2] sm:$0xf]
    %v611 = vmax.f32 %v610, %v609
    %v612 = vsub.f32 %v610, %v611
    %v613 = vmul.f32 %v612, 1.442695
    %v614 = vpow.pop %v613
    %vm615 = vcmask 19456
    %616 = vst.msk [vmem:[#allocation2] sm:$0xf] %vm615, %v611
    %vm617 = vcmask 23552
    %v619 = vsel %vm617, %v611, 0
    %vm621 = vcmask 1042432
    %v623 = vsel %vm621, %v572, 0
    %625 = vmatprep.subr.mxu0 0.0
    %626 = vmatpush1.msra.mxu0 %v623
    %627 = vmatprep.subr.mxu0 0.0
    %628 = vmatpush1.msra.mxu0 0.0
    %629 = vmatprep.subr.mxu0 0.0
    %630 = vmatpush1.msra.mxu0 0.0
    %631 = vmatprep.subr.mxu0 0.0
    %632 = vmatpush1.msra.mxu0 0.0
    %633 = vmatprep.subr.mxu0 0.0
    %634 = vmatpush1.msra.mxu0 0.0
    %635 = vmatprep.subr.mxu0 0.0
    %636 = vmatpush1.msra.mxu0 0.0
    %637 = vmatprep.subr.mxu0 0.0
    %638 = vmatpush1.msra.mxu0 0.0
    %639 = vmatprep.subr.mxu0 0.0
    %640 = vmatpush1.msra.mxu0 0.0
    %641 = vmatprep.subr.mxu0 0.0
    %642 = vmatpush1.msra.mxu0 0.0
    %643 = vmatprep.subr.mxu0 0.0
    %644 = vmatpush1.msra.mxu0 0.0
    %645 = vmatprep.subr.mxu0 0.0
    %646 = vmatpush1.msra.mxu0 0.0
    %647 = vmatprep.subr.mxu0 0.0
    %648 = vmatpush1.msra.mxu0 0.0
    %649 = vmatprep.subr.mxu0 0.0
    %650 = vmatpush1.msra.mxu0 0.0
    %651 = vmatprep.subr.mxu0 0.0
    %652 = vmatpush1.msra.mxu0 0.0
    %653 = vmatprep.subr.mxu0 0.0
    %654 = vmatpush1.msra.mxu0 0.0
    %655 = vmatprep.subr.mxu0 0.0
    %656 = vmatpush1.msra.mxu0 0.0
    %657 = vmatprep.subr.mxu0 0.0
    %658 = vmatpush1.msra.mxu0 0.0
    %659 = vmatprep.subr.mxu0 0.0
    %660 = vmatpush1.msra.mxu0 0.0
    %661 = vmatprep.subr.mxu0 0.0
    %662 = vmatpush1.msra.mxu0 0.0
    %663 = vmatprep.subr.mxu0 0.0
    %664 = vmatpush1.msra.mxu0 0.0
    %665 = vmatprep.subr.mxu0 0.0
    %666 = vmatpush1.msra.mxu0 0.0
    %667 = vmatprep.subr.mxu0 0.0
    %668 = vmatpush1.msra.mxu0 0.0
    %669 = vmatprep.subr.mxu0 0.0
    %670 = vmatpush1.msra.mxu0 0.0
    %671 = vmatprep.subr.mxu0 0.0
    %672 = vmatpush1.msra.mxu0 0.0
    %673 = vmatprep.subr.mxu0 0.0
    %674 = vmatpush1.msra.mxu0 0.0
    %675 = vmatprep.subr.mxu0 0.0
    %676 = vmatpush1.msra.mxu0 0.0
    %677 = vmatprep.subr.mxu0 0.0
    %678 = vmatpush1.msra.mxu0 0.0
    %679 = vmatprep.subr.mxu0 0.0
    %680 = vmatpush1.msra.mxu0 0.0
    %681 = vmatprep.subr.mxu0 0.0
    %682 = vmatpush1.msra.mxu0 0.0
    %683 = vmatprep.subr.mxu0 0.0
    %684 = vmatpush1.msra.mxu0 0.0
    %685 = vmatprep.subr.mxu0 0.0
    %686 = vmatpush1.msra.mxu0 0.0
    %687 = vmatprep.subr.mxu0 0.0
    %688 = vmatpush1.msra.mxu0 0.0
    %689 = vmatprep.mubr.f32.mxu0 0.0
    %690 = vmatmul.mubr.f32.gmra.mrb[0].mxu0 %v619
    %v691 = vpop.f32.mrb[0].mxu0
    %v692 = vadd.f32 0.0, %v691
    %v693 = vpop.f32.mrb[0].mxu0
    %694 = vdwg.mxu0
    %v695 = vsub.f32 %v580, %v692
    %v696 = vmul.f32 %v695, 1.442695
    %v697 = vpow.pop %v696
    %698 = vmatprep.subr.mxu0 0.0
    %699 = vmatpush1.xpose.msra.mxu0 %v572
    %700 = vmatprep.subr.mxu0 0.0
    %701 = vmatpush1.xpose.msra.mxu0 0.0
    %702 = vmatprep.subr.mxu0 0.0
    %703 = vmatpush1.xpose.msra.mxu0 0.0
    %704 = vmatprep.subr.mxu0 0.0
    %705 = vmatpush1.xpose.msra.mxu0 0.0
    %706 = vmatprep.subr.mxu0 0.0
    %707 = vmatpush1.xpose.msra.mxu0 0.0
    %708 = vmatprep.subr.mxu0 0.0
    %709 = vmatpush1.xpose.msra.mxu0 0.0
    %710 = vmatprep.subr.mxu0 0.0
    %711 = vmatpush1.xpose.msra.mxu0 0.0
    %712 = vmatprep.subr.mxu0 0.0
    %713 = vmatpush1.xpose.msra.mxu0 0.0
    %714 = vmatprep.subr.mxu0 0.0
    %715 = vmatpush1.xpose.msra.mxu0 0.0
    %716 = vmatprep.subr.mxu0 0.0
    %717 = vmatpush1.xpose.msra.mxu0 0.0
    %718 = vmatprep.subr.mxu0 0.0
    %719 = vmatpush1.xpose.msra.mxu0 0.0
    %720 = vmatprep.subr.mxu0 0.0
    %721 = vmatpush1.xpose.msra.mxu0 0.0
    %722 = vmatprep.subr.mxu0 0.0
    %723 = vmatpush1.xpose.msra.mxu0 0.0
    %724 = vmatprep.subr.mxu0 0.0
    %725 = vmatpush1.xpose.msra.mxu0 0.0
    %726 = vmatprep.subr.mxu0 0.0
    %727 = vmatpush1.xpose.msra.mxu0 0.0
    %728 = vmatprep.subr.mxu0 0.0
    %729 = vmatpush1.xpose.msra.mxu0 0.0
    %730 = vmatprep.subr.mxu0 0.0
    %731 = vmatpush1.xpose.msra.mxu0 0.0
    %732 = vmatprep.subr.mxu0 0.0
    %733 = vmatpush1.xpose.msra.mxu0 0.0
    %734 = vmatprep.subr.mxu0 0.0
    %735 = vmatpush1.xpose.msra.mxu0 0.0
    %736 = vmatprep.subr.mxu0 0.0
    %737 = vmatpush1.xpose.msra.mxu0 0.0
    %738 = vmatprep.subr.mxu0 0.0
    %739 = vmatpush1.xpose.msra.mxu0 0.0
    %740 = vmatprep.subr.mxu0 0.0
    %741 = vmatpush1.xpose.msra.mxu0 0.0
    %742 = vmatprep.subr.mxu0 0.0
    %743 = vmatpush1.xpose.msra.mxu0 0.0
    %744 = vmatprep.subr.mxu0 0.0
    %745 = vmatpush1.xpose.msra.mxu0 0.0
    %746 = vmatprep.subr.mxu0 0.0
    %747 = vmatpush1.xpose.msra.mxu0 0.0
    %748 = vmatprep.subr.mxu0 0.0
    %749 = vmatpush1.xpose.msra.mxu0 0.0
    %750 = vmatprep.subr.mxu0 0.0
    %751 = vmatpush1.xpose.msra.mxu0 0.0
    %752 = vmatprep.subr.mxu0 0.0
    %753 = vmatpush1.xpose.msra.mxu0 0.0
    %754 = vmatprep.subr.mxu0 0.0
    %755 = vmatpush1.xpose.msra.mxu0 0.0
    %756 = vmatprep.subr.mxu0 0.0
    %757 = vmatpush1.xpose.msra.mxu0 0.0
    %758 = vmatprep.subr.mxu0 0.0
    %759 = vmatpush1.xpose.msra.mxu0 0.0
    %760 = vmatprep.subr.mxu0 0.0
    %761 = vmatpush1.xpose.msra.mxu0 0.0
    %762 = vmatprep.mubr.f32.mxu0 0.0
    %763 = vmatmul.mubr.f32.gmra.mrb[0].mxu0 %v697
    %v764 = vpop.f32.mrb[0].mxu0
    %v765 = vadd.f32 0.0, %v764
    %v766 = vpop.f32.mrb[0].mxu0
    %767 = vdwg.mxu0
    %vm768 = vcmask 31744
    %v770 = vsel %vm768, %v86, 0
    %v773 = vsel %vm768, %v87, 0
    %v776 = vsel %vm768, %v88, 0
    %v779 = vsel %vm768, %v89, 0
    %v782 = vsel %vm586, %v697, 0
    %784 = vmatprep.subr.mxu0 0.0
    %785 = vmatpush1.msra.mxu0 %v782
    %786 = vmatprep.subr.mxu0 0.0
    %787 = vmatpush1.msra.mxu0 0.0
    %788 = vmatprep.subr.mxu0 0.0
    %789 = vmatpush1.msra.mxu0 0.0
    %790 = vmatprep.subr.mxu0 0.0
    %791 = vmatpush1.msra.mxu0 0.0
    %792 = vmatprep.subr.mxu0 0.0
    %793 = vmatpush1.msra.mxu0 0.0
    %794 = vmatprep.subr.mxu0 0.0
    %795 = vmatpush1.msra.mxu0 0.0
    %796 = vmatprep.subr.mxu0 0.0
    %797 = vmatpush1.msra.mxu0 0.0
    %798 = vmatprep.subr.mxu0 0.0
    %799 = vmatpush1.msra.mxu0 0.0
    %800 = vmatprep.subr.mxu0 0.0
    %801 = vmatpush1.msra.mxu0 0.0
    %802 = vmatprep.subr.mxu0 0.0
    %803 = vmatpush1.msra.mxu0 0.0
    %804 = vmatprep.subr.mxu0 0.0
    %805 = vmatpush1.msra.mxu0 0.0
    %806 = vmatprep.subr.mxu0 0.0
    %807 = vmatpush1.msra.mxu0 0.0
    %808 = vmatprep.subr.mxu0 0.0
    %809 = vmatpush1.msra.mxu0 0.0
    %810 = vmatprep.subr.mxu0 0.0
    %811 = vmatpush1.msra.mxu0 0.0
    %812 = vmatprep.subr.mxu0 0.0
    %813 = vmatpush1.msra.mxu0 0.0
    %814 = vmatprep.subr.mxu0 0.0
    %815 = vmatpush1.msra.mxu0 0.0
    %816 = vmatprep.subr.mxu0 0.0
    %817 = vmatpush1.msra.mxu0 0.0
    %818 = vmatprep.subr.mxu0 0.0
    %819 = vmatpush1.msra.mxu0 0.0
    %820 = vmatprep.subr.mxu0 0.0
    %821 = vmatpush1.msra.mxu0 0.0
    %822 = vmatprep.subr.mxu0 0.0
    %823 = vmatpush1.msra.mxu0 0.0
    %824 = vmatprep.subr.mxu0 0.0
    %825 = vmatpush1.msra.mxu0 0.0
    %826 = vmatprep.subr.mxu0 0.0
    %827 = vmatpush1.msra.mxu0 0.0
    %828 = vmatprep.subr.mxu0 0.0
    %829 = vmatpush1.msra.mxu0 0.0
    %830 = vmatprep.subr.mxu0 0.0
    %831 = vmatpush1.msra.mxu0 0.0
    %832 = vmatprep.subr.mxu0 0.0
    %833 = vmatpush1.msra.mxu0 0.0
    %834 = vmatprep.subr.mxu0 0.0
    %835 = vmatpush1.msra.mxu0 0.0
    %836 = vmatprep.subr.mxu0 0.0
    %837 = vmatpush1.msra.mxu0 0.0
    %838 = vmatprep.subr.mxu0 0.0
    %839 = vmatpush1.msra.mxu0 0.0
    %840 = vmatprep.subr.mxu0 0.0
    %841 = vmatpush1.msra.mxu0 0.0
    %842 = vmatprep.subr.mxu0 0.0
    %843 = vmatpush1.msra.mxu0 0.0
    %844 = vmatprep.subr.mxu0 0.0
    %845 = vmatpush1.msra.mxu0 0.0
    %846 = vmatprep.subr.mxu0 0.0
    %847 = vmatpush1.msra.mxu0 0.0
    %848 = vmatprep.mubr.f32.mxu0 0.0
    %849 = vmatmul.mubr.f32.gmra.mrb[0].mxu0 %v770
    %v850 = vpop.f32.mrb[0].mxu0
    %v851 = vadd.f32 0.0, %v850
    %v852 = vpop.f32.mrb[0].mxu0
    %853 = vmatprep.mubr.f32.mxu0 0.0
    %854 = vmatmul.mubr.f32.gmra.mrb[0].mxu0 %v773
    %v855 = vpop.f32.mrb[0].mxu0
    %v856 = vadd.f32 0.0, %v855
    %v857 = vpop.f32.mrb[0].mxu0
    %858 = vmatprep.mubr.f32.mxu0 0.0
    %859 = vmatmul.mubr.f32.gmra.mrb[0].mxu0 %v776
    %v860 = vpop.f32.mrb[0].mxu0
    %v861 = vadd.f32 0.0, %v860
    %v862 = vpop.f32.mrb[0].mxu0
    %863 = vmatprep.mubr.f32.mxu0 0.0
    %864 = vmatmul.mubr.f32.gmra.mrb[0].mxu0 %v779
    %v865 = vpop.f32.mrb[0].mxu0
    %v866 = vadd.f32 0.0, %v865
    %v867 = vpop.f32.mrb[0].mxu0
    %868 = vdwg.mxu0
    %v869 = vmul.f32 %v851, %v547
    %v870 = vmul.f32 %v856, %v552
    %v871 = vmul.f32 %v861, %v557
    %v872 = vmul.f32 %v866, %v562
    %873 = vmatprep.subr.mxu0 0.0
    %874 = vmatpush1.xpose.msra.mxu0 %v572
    %875 = vmatprep.subr.mxu0 0.0
    %876 = vmatpush1.xpose.msra.mxu0 0.0
    %877 = vmatprep.subr.mxu0 0.0
    %878 = vmatpush1.xpose.msra.mxu0 0.0
    %879 = vmatprep.subr.mxu0 0.0
    %880 = vmatpush1.xpose.msra.mxu0 0.0
    %881 = vmatprep.subr.mxu0 0.0
    %882 = vmatpush1.xpose.msra.mxu0 0.0
    %883 = vmatprep.subr.mxu0 0.0
    %884 = vmatpush1.xpose.msra.mxu0 0.0
    %885 = vmatprep.subr.mxu0 0.0
    %886 = vmatpush1.xpose.msra.mxu0 0.0
    %887 = vmatprep.subr.mxu0 0.0
    %888 = vmatpush1.xpose.msra.mxu0 0.0
    %889 = vmatprep.subr.mxu0 0.0
    %890 = vmatpush1.xpose.msra.mxu0 0.0
    %891 = vmatprep.subr.mxu0 0.0
    %892 = vmatpush1.xpose.msra.mxu0 0.0
    %893 = vmatprep.subr.mxu0 0.0
    %894 = vmatpush1.xpose.msra.mxu0 0.0
    %895 = vmatprep.subr.mxu0 0.0
    %896 = vmatpush1.xpose.msra.mxu0 0.0
    %897 = vmatprep.subr.mxu0 0.0
    %898 = vmatpush1.xpose.msra.mxu0 0.0
    %899 = vmatprep.subr.mxu0 0.0
    %900 = vmatpush1.xpose.msra.mxu0 0.0
    %901 = vmatprep.subr.mxu0 0.0
    %902 = vmatpush1.xpose.msra.mxu0 0.0
    %903 = vmatprep.subr.mxu0 0.0
    %904 = vmatpush1.xpose.msra.mxu0 0.0
    %905 = vmatprep.subr.mxu0 0.0
    %906 = vmatpush1.xpose.msra.mxu0 0.0
    %907 = vmatprep.subr.mxu0 0.0
    %908 = vmatpush1.xpose.msra.mxu0 0.0
    %909 = vmatprep.subr.mxu0 0.0
    %910 = vmatpush1.xpose.msra.mxu0 0.0
    %911 = vmatprep.subr.mxu0 0.0
    %912 = vmatpush1.xpose.msra.mxu0 0.0
    %913 = vmatprep.subr.mxu0 0.0
    %914 = vmatpush1.xpose.msra.mxu0 0.0
    %915 = vmatprep.subr.mxu0 0.0
    %916 = vmatpush1.xpose.msra.mxu0 0.0
    %917 = vmatprep.subr.mxu0 0.0
    %918 = vmatpush1.xpose.msra.mxu0 0.0
    %919 = vmatprep.subr.mxu0 0.0
    %920 = vmatpush1.xpose.msra.mxu0 0.0
    %921 = vmatprep.subr.mxu0 0.0
    %922 = vmatpush1.xpose.msra.mxu0 0.0
    %923 = vmatprep.subr.mxu0 0.0
    %924 = vmatpush1.xpose.msra.mxu0 0.0
    %925 = vmatprep.subr.mxu0 0.0
    %926 = vmatpush1.xpose.msra.mxu0 0.0
    %927 = vmatprep.subr.mxu0 0.0
    %928 = vmatpush1.xpose.msra.mxu0 0.0
    %929 = vmatprep.subr.mxu0 0.0
    %930 = vmatpush1.xpose.msra.mxu0 0.0
    %931 = vmatprep.subr.mxu0 0.0
    %932 = vmatpush1.xpose.msra.mxu0 0.0
    %933 = vmatprep.subr.mxu0 0.0
    %934 = vmatpush1.xpose.msra.mxu0 0.0
    %935 = vmatprep.subr.mxu0 0.0
    %936 = vmatpush1.xpose.msra.mxu0 0.0
    %937 = vmatprep.mubr.f32.mxu0 0.0
    %938 = vmatmul.mubr.f32.gmra.mrb[0].mxu0 %v869
    %v939 = vpop.f32.mrb[0].mxu0
    %v940 = vadd.f32 0.0, %v939
    %v941 = vpop.f32.mrb[0].mxu0
    %942 = vmatprep.mubr.f32.mxu0 0.0
    %943 = vmatmul.mubr.f32.gmra.mrb[0].mxu0 %v870
    %v944 = vpop.f32.mrb[0].mxu0
    %v945 = vadd.f32 0.0, %v944
    %v946 = vpop.f32.mrb[0].mxu0
    %947 = vmatprep.mubr.f32.mxu0 0.0
    %948 = vmatmul.mubr.f32.gmra.mrb[0].mxu0 %v871
    %v949 = vpop.f32.mrb[0].mxu0
    %v950 = vadd.f32 0.0, %v949
    %v951 = vpop.f32.mrb[0].mxu0
    %952 = vmatprep.mubr.f32.mxu0 0.0
    %953 = vmatmul.mubr.f32.gmra.mrb[0].mxu0 %v872
    %v954 = vpop.f32.mrb[0].mxu0
    %v955 = vadd.f32 0.0, %v954
    %v956 = vpop.f32.mrb[0].mxu0
    %957 = vdwg.mxu0
    %v959 = vsel %vm586, %v614, 0
    %961 = vmatprep.subr.mxu0 0.0
    %962 = vmatpush1.msra.mxu0 %v959
    %963 = vmatprep.subr.mxu0 0.0
    %964 = vmatpush1.msra.mxu0 0.0
    %965 = vmatprep.subr.mxu0 0.0
    %966 = vmatpush1.msra.mxu0 0.0
    %967 = vmatprep.subr.mxu0 0.0
    %968 = vmatpush1.msra.mxu0 0.0
    %969 = vmatprep.subr.mxu0 0.0
    %970 = vmatpush1.msra.mxu0 0.0
    %971 = vmatprep.subr.mxu0 0.0
    %972 = vmatpush1.msra.mxu0 0.0
    %973 = vmatprep.subr.mxu0 0.0
    %974 = vmatpush1.msra.mxu0 0.0
    %975 = vmatprep.subr.mxu0 0.0
    %976 = vmatpush1.msra.mxu0 0.0
    %977 = vmatprep.subr.mxu0 0.0
    %978 = vmatpush1.msra.mxu0 0.0
    %979 = vmatprep.subr.mxu0 0.0
    %980 = vmatpush1.msra.mxu0 0.0
    %981 = vmatprep.subr.mxu0 0.0
    %982 = vmatpush1.msra.mxu0 0.0
    %983 = vmatprep.subr.mxu0 0.0
    %984 = vmatpush1.msra.mxu0 0.0
    %985 = vmatprep.subr.mxu0 0.0
    %986 = vmatpush1.msra.mxu0 0.0
    %987 = vmatprep.subr.mxu0 0.0
    %988 = vmatpush1.msra.mxu0 0.0
    %989 = vmatprep.subr.mxu0 0.0
    %990 = vmatpush1.msra.mxu0 0.0
    %991 = vmatprep.subr.mxu0 0.0
    %992 = vmatpush1.msra.mxu0 0.0
    %993 = vmatprep.subr.mxu0 0.0
    %994 = vmatpush1.msra.mxu0 0.0
    %995 = vmatprep.subr.mxu0 0.0
    %996 = vmatpush1.msra.mxu0 0.0
    %997 = vmatprep.subr.mxu0 0.0
    %998 = vmatpush1.msra.mxu0 0.0
    %999 = vmatprep.subr.mxu0 0.0
    %1000 = vmatpush1.msra.mxu0 0.0
    %1001 = vmatprep.subr.mxu0 0.0
    %1002 = vmatpush1.msra.mxu0 0.0
    %1003 = vmatprep.subr.mxu0 0.0
    %1004 = vmatpush1.msra.mxu0 0.0
    %1005 = vmatprep.subr.mxu0 0.0
    %1006 = vmatpush1.msra.mxu0 0.0
    %1007 = vmatprep.subr.mxu0 0.0
    %1008 = vmatpush1.msra.mxu0 0.0
    %1009 = vmatprep.subr.mxu0 0.0
    %1010 = vmatpush1.msra.mxu0 0.0
    %1011 = vmatprep.subr.mxu0 0.0
    %1012 = vmatpush1.msra.mxu0 0.0
    %1013 = vmatprep.subr.mxu0 0.0
    %1014 = vmatpush1.msra.mxu0 0.0
    %1015 = vmatprep.subr.mxu0 0.0
    %1016 = vmatpush1.msra.mxu0 0.0
    %1017 = vmatprep.subr.mxu0 0.0
    %1018 = vmatpush1.msra.mxu0 0.0
    %1019 = vmatprep.subr.mxu0 0.0
    %1020 = vmatpush1.msra.mxu0 0.0
    %1021 = vmatprep.subr.mxu0 0.0
    %1022 = vmatpush1.msra.mxu0 0.0
    %1023 = vmatprep.subr.mxu0 0.0
    %1024 = vmatpush1.msra.mxu0 0.0
    %1025 = vmatprep.mubr.f32.mxu0 0.0
    %1026 = vmatmul.mubr.f32.gmra.mrb[0].mxu0 %v770
    %v1027 = vpop.f32.mrb[0].mxu0
    %v1028 = vadd.f32 0.0, %v1027
    %v1029 = vpop.f32.mrb[0].mxu0
    %1030 = vmatprep.mubr.f32.mxu0 0.0
    %1031 = vmatmul.mubr.f32.gmra.mrb[0].mxu0 %v773
    %v1032 = vpop.f32.mrb[0].mxu0
    %v1033 = vadd.f32 0.0, %v1032
    %v1034 = vpop.f32.mrb[0].mxu0
    %1035 = vmatprep.mubr.f32.mxu0 0.0
    %1036 = vmatmul.mubr.f32.gmra.mrb[0].mxu0 %v776
    %v1037 = vpop.f32.mrb[0].mxu0
    %v1038 = vadd.f32 0.0, %v1037
    %v1039 = vpop.f32.mrb[0].mxu0
    %1040 = vmatprep.mubr.f32.mxu0 0.0
    %1041 = vmatmul.mubr.f32.gmra.mrb[0].mxu0 %v779
    %v1042 = vpop.f32.mrb[0].mxu0
    %v1043 = vadd.f32 0.0, %v1042
    %v1044 = vpop.f32.mrb[0].mxu0
    %1045 = vdwg.mxu0
    %v1046 = vld [vmem:[#allocation3] sm:$0xf]
    %v1047 = vmul.f32 %v1046, %v614
    %v1048 = vadd.f32 %v1047, %v765
    %1049 = vst.msk [vmem:[#allocation3] sm:$0xf] %vm615, %v1048
    %v1050 = vld [vmem:[#allocation4] sm:$0xff]
    %v1051 = vld [vmem:[#allocation4 + $0x8] sm:$0xff]
    %v1052 = vld [vmem:[#allocation4 + $0x10] sm:$0xff]
    %v1053 = vld [vmem:[#allocation4 + $0x18] sm:$0xff]
    %v1054 = vmul.f32 %v1050, %v1028
    %v1055 = vmul.f32 %v1051, %v1033
    %v1056 = vmul.f32 %v1052, %v1038
    %v1057 = vmul.f32 %v1053, %v1043
    %v1058 = vadd.f32 %v1054, %v940
    %v1059 = vadd.f32 %v1055, %v945
    %v1060 = vadd.f32 %v1056, %v950
    %v1061 = vadd.f32 %v1057, %v955
    %1062 = vst.msk [vmem:[#allocation4] sm:$0xff] %vm617, %v1058
    %1063 = vst.msk [vmem:[#allocation4 + $0x8] sm:$0xff] %vm617, %v1059
    %1064 = vst.msk [vmem:[#allocation4 + $0x10] sm:$0xff] %vm617, %v1060
    %1065 = vst.msk [vmem:[#allocation4 + $0x18] sm:$0xff] %vm617, %v1061
    // Predicated region
    $region34: #{tpu_custom_call.1} parent=1 // pred_check
      %p1066 = pneg %p27
    $region35: #{tpu_custom_call.1} parent=1 // pred_check_branch
      %1068 = sbr.rel (%p1066) target = $region37
    $region36: #{tpu_custom_call.1} parent=1 // pred_region
      %v1069 = vld [vmem:[#allocation3] sm:$0xf]
      %v1070 = vadd.f32 %v1069, 1e-16
      %v1071 = vrcp.pop %v1070
      %v1073 = vsel %vm586, %v1071, 0
      %1075 = vmatprep.subr.mxu0 0.0
      %1076 = vmatpush1.msra.mxu0 %v1073
      %1077 = vmatprep.subr.mxu0 0.0
      %1078 = vmatpush1.msra.mxu0 0.0
      %1079 = vmatprep.subr.mxu0 0.0
      %1080 = vmatpush1.msra.mxu0 0.0
      %1081 = vmatprep.subr.mxu0 0.0
      %1082 = vmatpush1.msra.mxu0 0.0
      %1083 = vmatprep.subr.mxu0 0.0
      %1084 = vmatpush1.msra.mxu0 0.0
      %1085 = vmatprep.subr.mxu0 0.0
      %1086 = vmatpush1.msra.mxu0 0.0
      %1087 = vmatprep.subr.mxu0 0.0
      %1088 = vmatpush1.msra.mxu0 0.0
      %1089 = vmatprep.subr.mxu0 0.0
      %1090 = vmatpush1.msra.mxu0 0.0
      %1091 = vmatprep.subr.mxu0 0.0
      %1092 = vmatpush1.msra.mxu0 0.0
      %1093 = vmatprep.subr.mxu0 0.0
      %1094 = vmatpush1.msra.mxu0 0.0
      %1095 = vmatprep.subr.mxu0 0.0
      %1096 = vmatpush1.msra.mxu0 0.0
      %1097 = vmatprep.subr.mxu0 0.0
      %1098 = vmatpush1.msra.mxu0 0.0
      %1099 = vmatprep.subr.mxu0 0.0
      %1100 = vmatpush1.msra.mxu0 0.0
      %1101 = vmatprep.subr.mxu0 0.0
      %1102 = vmatpush1.msra.mxu0 0.0
      %1103 = vmatprep.subr.mxu0 0.0
      %1104 = vmatpush1.msra.mxu0 0.0
      %1105 = vmatprep.subr.mxu0 0.0
      %1106 = vmatpush1.msra.mxu0 0.0
      %1107 = vmatprep.subr.mxu0 0.0
      %1108 = vmatpush1.msra.mxu0 0.0
      %1109 = vmatprep.subr.mxu0 0.0
      %1110 = vmatpush1.msra.mxu0 0.0
      %1111 = vmatprep.subr.mxu0 0.0
      %1112 = vmatpush1.msra.mxu0 0.0
      %1113 = vmatprep.subr.mxu0 0.0
      %1114 = vmatpush1.msra.mxu0 0.0
      %1115 = vmatprep.subr.mxu0 0.0
      %1116 = vmatpush1.msra.mxu0 0.0
      %1117 = vmatprep.subr.mxu0 0.0
      %1118 = vmatpush1.msra.mxu0 0.0
      %1119 = vmatprep.subr.mxu0 0.0
      %1120 = vmatpush1.msra.mxu0 0.0
      %1121 = vmatprep.subr.mxu0 0.0
      %1122 = vmatpush1.msra.mxu0 0.0
      %1123 = vmatprep.subr.mxu0 0.0
      %1124 = vmatpush1.msra.mxu0 0.0
      %1125 = vmatprep.subr.mxu0 0.0
      %1126 = vmatpush1.msra.mxu0 0.0
      %1127 = vmatprep.subr.mxu0 0.0
      %1128 = vmatpush1.msra.mxu0 0.0
      %1129 = vmatprep.subr.mxu0 0.0
      %1130 = vmatpush1.msra.mxu0 0.0
      %1131 = vmatprep.subr.mxu0 0.0
      %1132 = vmatpush1.msra.mxu0 0.0
      %1133 = vmatprep.subr.mxu0 0.0
      %1134 = vmatpush1.msra.mxu0 0.0
      %1135 = vmatprep.subr.mxu0 0.0
      %1136 = vmatpush1.msra.mxu0 0.0
      %1137 = vmatprep.subr.mxu0 0.0
      %1138 = vmatpush1.msra.mxu0 0.0
      %1139 = vmatprep.mubr.f32.mxu0 0.0
      %1140 = vmatmul.mubr.f32.gmra.mrb[0].mxu0 %v770
      %v1141 = vpop.f32.mrb[0].mxu0
      %v1142 = vadd.f32 0.0, %v1141
      %v1143 = vpop.f32.mrb[0].mxu0
      %1144 = vmatprep.mubr.f32.mxu0 0.0
      %1145 = vmatmul.mubr.f32.gmra.mrb[0].mxu0 %v773
      %v1146 = vpop.f32.mrb[0].mxu0
      %v1147 = vadd.f32 0.0, %v1146
      %v1148 = vpop.f32.mrb[0].mxu0
      %1149 = vmatprep.mubr.f32.mxu0 0.0
      %1150 = vmatmul.mubr.f32.gmra.mrb[0].mxu0 %v776
      %v1151 = vpop.f32.mrb[0].mxu0
      %v1152 = vadd.f32 0.0, %v1151
      %v1153 = vpop.f32.mrb[0].mxu0
      %1154 = vmatprep.mubr.f32.mxu0 0.0
      %1155 = vmatmul.mubr.f32.gmra.mrb[0].mxu0 %v779
      %v1156 = vpop.f32.mrb[0].mxu0
      %v1157 = vadd.f32 0.0, %v1156
      %v1158 = vpop.f32.mrb[0].mxu0
      %1159 = vdwg.mxu0
      %v1160 = vld [vmem:[#allocation4] sm:$0xff]
      %v1161 = vld [vmem:[#allocation4 + $0x8] sm:$0xff]
      %v1162 = vld [vmem:[#allocation4 + $0x10] sm:$0xff]
      %v1163 = vld [vmem:[#allocation4 + $0x18] sm:$0xff]
      %v1164 = vmul.f32 %v1160, %v1142
      %v1165 = vmul.f32 %v1161, %v1147
      %v1166 = vmul.f32 %v1162, %v1152
      %v1167 = vmul.f32 %v1163, %v1157
      %v1168 = vld [vmem:[%s6] sm:$0xff]
      %v1169 = vld [vmem:[%s6 + $0x8] sm:$0xff]
      %v1170 = vld [vmem:[%s6 + $0x10] sm:$0xff]
      %v1171 = vld [vmem:[%s6 + $0x18] sm:$0xff]
      %1172 = vxpose.xlu0.b32.start [1/16] %v1164, 128
      %1173 = vxpose.xlu0.b32.cont [2/16] %v1165, 128
      %1174 = vxpose.xlu0.b32.cont [3/16] %v1166, 128
      %1175 = vxpose.xlu0.b32.cont [4/16] %v1167, 128
      %1176 = vxpose.xlu0.b32.cont [5/16] 0.0, 128
      %1177 = vxpose.xlu0.b32.cont [6/16] 0.0, 128
      %1178 = vxpose.xlu0.b32.cont [7/16] 0.0, 128
      %1179 = vxpose.xlu0.b32.cont [8/16] 0.0, 128
      %1180 = vxpose.xlu0.b32.cont [9/16] 0.0, 128
      %1181 = vxpose.xlu0.b32.cont [10/16] 0.0, 128
      %1182 = vxpose.xlu0.b32.cont [11/16] 0.0, 128
      %1183 = vxpose.xlu0.b32.cont [12/16] 0.0, 128
      %1184 = vxpose.xlu0.b32.cont [13/16] 0.0, 128
      %1185 = vxpose.xlu0.b32.cont [14/16] 0.0, 128
      %1186 = vxpose.xlu0.b32.cont [15/16] 0.0, 128
      %1187 = vxpose.xlu0.b32.end [16/16] 0.0, 128
      %v1188 = vpop.trf.xlu0
      %v1189 = vpop.trf.xlu0
      %v1190 = vpop.trf.xlu0
      %v1191 = vpop.trf.xlu0
      %v1192 = vpop.trf.xlu0
      %v1193 = vpop.trf.xlu0
      %v1194 = vpop.trf.xlu0
      %v1195 = vpop.trf.xlu0
      %v1196 = vpop.trf.xlu0
      %v1197 = vpop.trf.xlu0
      %v1198 = vpop.trf.xlu0
      %v1199 = vpop.trf.xlu0
      %v1200 = vpop.trf.xlu0
      %v1201 = vpop.trf.xlu0
      %v1202 = vpop.trf.xlu0
      %v1203 = vpop.trf.xlu0
      %vm1204 = vcmask 261120
      %v1206 = vsel %vm1204, %v1188, 0
      %1208 = vmatprep.subr.mxu0 0.0
      %1209 = vmatpush1.msra.mxu0 %v1168
      %1210 = vmatprep.subr.mxu0 0.0
      %1211 = vmatpush1.msra.mxu0 %v1169
      %1212 = vmatprep.subr.mxu0 0.0
      %1213 = vmatpush1.msra.mxu0 %v1170
      %1214 = vmatprep.subr.mxu0 0.0
      %1215 = vmatpush1.msra.mxu0 %v1171
      %1216 = vmatprep.subr.mxu0 0.0
      %1217 = vmatpush1.msra.mxu0 0.0
      %1218 = vmatprep.subr.mxu0 0.0
      %1219 = vmatpush1.msra.mxu0 0.0
      %1220 = vmatprep.subr.mxu0 0.0
      %1221 = vmatpush1.msra.mxu0 0.0
      %1222 = vmatprep.subr.mxu0 0.0
      %1223 = vmatpush1.msra.mxu0 0.0
      %1224 = vmatprep.subr.mxu0 0.0
      %1225 = vmatpush1.msra.mxu0 0.0
      %1226 = vmatprep.subr.mxu0 0.0
      %1227 = vmatpush1.msra.mxu0 0.0
      %1228 = vmatprep.subr.mxu0 0.0
      %1229 = vmatpush1.msra.mxu0 0.0
      %1230 = vmatprep.subr.mxu0 0.0
      %1231 = vmatpush1.msra.mxu0 0.0
      %1232 = vmatprep.subr.mxu0 0.0
      %1233 = vmatpush1.msra.mxu0 0.0
      %1234 = vmatprep.subr.mxu0 0.0
      %1235 = vmatpush1.msra.mxu0 0.0
      %1236 = vmatprep.subr.mxu0 0.0
      %1237 = vmatpush1.msra.mxu0 0.0
      %1238 = vmatprep.subr.mxu0 0.0
      %1239 = vmatpush1.msra.mxu0 0.0
      %1240 = vmatprep.subr.mxu0 0.0
      %1241 = vmatpush1.msra.mxu0 0.0
      %1242 = vmatprep.subr.mxu0 0.0
      %1243 = vmatpush1.msra.mxu0 0.0
      %1244 = vmatprep.subr.mxu0 0.0
      %1245 = vmatpush1.msra.mxu0 0.0
      %1246 = vmatprep.subr.mxu0 0.0
      %1247 = vmatpush1.msra.mxu0 0.0
      %1248 = vmatprep.subr.mxu0 0.0
      %1249 = vmatpush1.msra.mxu0 0.0
      %1250 = vmatprep.subr.mxu0 0.0
      %1251 = vmatpush1.msra.mxu0 0.0
      %1252 = vmatprep.subr.mxu0 0.0
      %1253 = vmatpush1.msra.mxu0 0.0
      %1254 = vmatprep.subr.mxu0 0.0
      %1255 = vmatpush1.msra.mxu0 0.0
      %1256 = vmatprep.subr.mxu0 0.0
      %1257 = vmatpush1.msra.mxu0 0.0
      %1258 = vmatprep.subr.mxu0 0.0
      %1259 = vmatpush1.msra.mxu0 0.0
      %1260 = vmatprep.subr.mxu0 0.0
      %1261 = vmatpush1.msra.mxu0 0.0
      %1262 = vmatprep.subr.mxu0 0.0
      %1263 = vmatpush1.msra.mxu0 0.0
      %1264 = vmatprep.subr.mxu0 0.0
      %1265 = vmatpush1.msra.mxu0 0.0
      %1266 = vmatprep.subr.mxu0 0.0
      %1267 = vmatpush1.msra.mxu0 0.0
      %1268 = vmatprep.subr.mxu0 0.0
      %1269 = vmatpush1.msra.mxu0 0.0
      %1270 = vmatprep.subr.mxu0 0.0
      %1271 = vmatpush1.msra.mxu0 0.0
      %1272 = vmatprep.mubr.f32.mxu0 0.0
      %1273 = vmatmul.mubr.f32.gmra.mrb[0].mxu0 %v1206
      %v1274 = vpop.f32.mrb[0].mxu0
      %v1275 = vadd.f32 0.0, %v1274
      %v1276 = vpop.f32.mrb[0].mxu0
      %1277 = vdwg.mxu0
      %vm1278 = vcmask 59392
      %1279 = vst.msk [vmem:[#allocation5] sm:$0x7] %vm1278, %v1275
    $region37: #{tpu_custom_call.1} parent=1 // pred_fallthru
      _
    // Predicated region
    $region38: #{tpu_custom_call.1} parent=1 // pred_check
      _
    $region39: #{tpu_custom_call.1} parent=1 // pred_check_branch
      %1281 = sbr.rel (0) target = $region41
    $region40: #{tpu_custom_call.1} parent=1 // pred_region
      %s1283 = ssub.s32 64, 64
      %1284 = vsyncadd [#allocation6], %s1283
      %s1286 = sshll.u32 [#allocation5], 4
      %s1287 = int_to_ptr.vmem [resolvable:$true] %s1286
      %1289 = dma.vmem_to_hbm [thread:$0]  %s1287, 64, %s7, [#allocation6]
    $region41: #{tpu_custom_call.1} parent=1 // pred_fallthru
      _
    // Predicated region
    $region42: #{tpu_custom_call.1} parent=1 // pred_check
      _
    $region43: #{tpu_custom_call.1} parent=1 // pred_check_branch
      %1291 = sbr.rel (0) target = $region45
    $region44: #{tpu_custom_call.1} parent=1 // pred_region
      %1292 = dma.done [#allocation6], 64
    $region45: #{tpu_custom_call.1} parent=1 // pred_fallthru
      _
    %1293 = vsyncpa [#allocation6], 1

</llo_original>
